<compile_context>
chip_gen: v6e
topology: v6e:2x2x1
jax: 0.10.0
libtpu: 0.0.40
codegen_flags: <defaults>
</compile_context>

<pallas_src>
import math

import jax
import jax.numpy as jnp
from jax import lax
from jax.experimental import pallas as pl
from jax.experimental.pallas import tpu as pltpu  # noqa: F401  (kept for TPU-specific tuning hooks)

# ---------------------------------------------------------------------------
# problem sizes (small, consistent with the module's hyper-parameters)
# ---------------------------------------------------------------------------
B = 2               # batch size
S = 8               # sentence (sequence) length
H = 32              # params.hidden_dim
N_HEAD = 4          # params.n_head
DH = H // N_HEAD    # attention dim per head
F = 64              # params.feed_forward_dim
G = N_HEAD * B      # head-batched attention groups, ordered g = h * B + b
EPS = 1e-6          # LayerNorm eps
NEG_INF = -1e30     # finite "minus infinity" for masking (no NaN on all-masked rows)


# ---------------------------------------------------------------------------
# Pallas kernel: the full encoder layer in one invocation (no grid)
# ---------------------------------------------------------------------------
def encoder_layer_kernel(x_ref, mask_ref, gamma_ref, beta_ref,
                         wqkv_ref, wo_ref, w1_ref, b1_ref, w2_ref, b2_ref,
                         out_ref):
    x = x_ref[...]                 # [B*S, H]  (tokens flattened in wrapper)
    gamma = gamma_ref[...]         # [1, H]
    beta = beta_ref[...]           # [1, H]

    inv_h = jnp.float32(1.0 / H)

    def layer_norm(t):
        # fused single-pass reduction: E[x] and E[x^2] together
        s1 = jnp.sum(t, axis=-1, keepdims=True)
        s2 = jnp.sum(t * t, axis=-1, keepdims=True)
        mu = s1 * inv_h
        var = s2 * inv_h - mu * mu
        return (t - mu) * lax.rsqrt(var + EPS) * gamma + beta

    # --- self attention branch (pre-LN) -----------------------------------
    ln1 = layer_norm(x)                                          # [B*S, H]

    # head-batched view of the activations: [G, S, H] with g = h*B + b.
    # Only a leading-axis broadcast + tile-aligned reshape (no transposes).
    ln1_g = jnp.broadcast_to(ln1, (N_HEAD, B * S, H)).reshape(G, S, H)

    # fused QKV projection: single batched einsum against [G, H, 3*DH]
    qkv = jnp.einsum('gse,gef->gsf', ln1_g, wqkv_ref[...],
                     preferred_element_type=jnp.float32)         # [G, S, 3*DH]

    inv_scale = jnp.float32(1.0 / math.sqrt(DH))
    qh = qkv[..., 0:DH] * inv_scale                              # [G, S, DH]
    kh = qkv[..., DH:2 * DH]                                     # [G, S, DH]
    vh = qkv[..., 2 * DH:3 * DH]                                 # [G, S, DH]

    scores = jnp.einsum('gqd,gkd->gqk', qh, kh,
                        preferred_element_type=jnp.float32)      # [G, S, S]
    scores = jnp.where(mask_ref[...] > 0.0, NEG_INF, scores)     # masked_fill

    # manual softmax; reciprocal goes to the (otherwise idle) EUP slot
    m = jnp.max(scores, axis=-1, keepdims=True)
    p = jnp.exp(scores - m)
    denom = jnp.sum(p, axis=-1, keepdims=True)
    probs = p * pl.reciprocal(denom, approx=True)                # [G, S, S]

    ctx = jnp.einsum('gqk,gkd->gqd', probs, vh,
                     preferred_element_type=jnp.float32)         # [G, S, DH]

    # head-batched output projection, then reduce over heads (leading axis)
    proj = jnp.einsum('gsd,gdh->gsh', ctx, wo_ref[...],
                      preferred_element_type=jnp.float32)        # [G, S, H]
    attn = jnp.sum(proj.reshape(N_HEAD, B * S, H), axis=0)       # [B*S, H]

    out1 = x + attn                                              # residual 1

    # --- position-wise FFN branch (pre-LN) ---------------------------------
    ln2 = layer_norm(out1)
    h1 = jnp.dot(ln2, w1_ref[...],
                 preferred_element_type=jnp.float32) + b1_ref[...]
    h1 = jnp.maximum(h1, 0.0)                                    # ReLU
    ffn = jnp.dot(h1, w2_ref[...],
                  preferred_element_type=jnp.float32) + b2_ref[...]

    out_ref[...] = out1 + ffn                                    # residual 2


# ---------------------------------------------------------------------------
# wrapper: weight restructuring (pure XLA) + single pallas_call
# ---------------------------------------------------------------------------
def encoder_layer(source, source_mask, params):
    (gamma, beta, wq, wk, wv, wo, w1, b1, w2, b2) = params

    # tokens flattened to [B*S, H]
    x_flat = source.reshape(B * S, H)

    # per-head fused QKV weight, replicated per batch: [G, H, 3*DH], g = h*B + b
    wq_h = wq.reshape(H, N_HEAD, DH)
    wk_h = wk.reshape(H, N_HEAD, DH)
    wv_h = wv.reshape(H, N_HEAD, DH)
    wqkv_heads = jnp.transpose(
        jnp.concatenate([wq_h, wk_h, wv_h], axis=-1), (1, 0, 2))   # [N_HEAD, H, 3*DH]
    wqkv_g = jnp.broadcast_to(wqkv_heads[:, None],
                              (N_HEAD, B, H, 3 * DH)).reshape(G, H, 3 * DH)

    # per-head output-projection weight, replicated per batch: [G, DH, H]
    wo_heads = wo.reshape(N_HEAD, DH, H)
    wo_g = jnp.broadcast_to(wo_heads[:, None],
                            (N_HEAD, B, DH, H)).reshape(G, DH, H)

    # mask expanded to head-batched groups: [G, S, S]
    mask_g = jnp.broadcast_to(source_mask, (N_HEAD, B, S, S)).reshape(G, S, S)

    args = (x_flat, mask_g, gamma, beta, wqkv_g, wo_g, w1, b1, w2, b2)

    flops = 2 * (G * S * H * 3 * DH          # QKV projection
                 + 2 * G * S * S * DH        # scores + probs@V
                 + G * S * DH * H            # output projection
                 + 2 * B * S * H * F)        # FFN matmuls
    transcendentals = G * S * S + G * S + 2 * B * S   # exp + recip + rsqrt
    bytes_accessed = 4 * (sum(a.size for a in args) + B * S * H)

    out_flat = pl.pallas_call(
        encoder_layer_kernel,
        out_shape=jax.ShapeDtypeStruct((B * S, H), jnp.float32),
        cost_estimate=pl.CostEstimate(flops=flops,
                                      transcendentals=transcendentals,
                                      bytes_accessed=bytes_accessed),
    )(*args)
    return out_flat.reshape(B, S, H)


# ---------------------------------------------------------------------------
# pure-JAX reference (for a correctness check)
# ---------------------------------------------------------------------------
def encoder_layer_ref(source, source_mask, params):
    (gamma, beta, wq, wk, wv, wo, w1, b1, w2, b2) = params

    def layer_norm(t):
        mu = jnp.mean(t, axis=-1, keepdims=True)
        var = jnp.mean((t - mu) ** 2, axis=-1, keepdims=True)
        return (t - mu) / jnp.sqrt(var + EPS) * gamma[0] + beta[0]

    ln1 = layer_norm(source)
    q = ln1 @ wq
    k = ln1 @ wk
    v = ln1 @ wv
    qh = q.reshape(B, S, N_HEAD, DH).transpose(0, 2, 1, 3)
    kh = k.reshape(B, S, N_HEAD, DH).transpose(0, 2, 1, 3)
    vh = v.reshape(B, S, N_HEAD, DH).transpose(0, 2, 1, 3)
    scores = jnp.einsum("bhqd,bhkd->bhqk", qh, kh) / math.sqrt(DH)
    scores = jnp.where(source_mask[:, None, :, :] > 0.0, NEG_INF, scores)
    probs = jax.nn.softmax(scores, axis=-1)
    ctx = jnp.einsum("bhqk,bhkd->bhqd", probs, vh)
    ctx = ctx.transpose(0, 2, 1, 3).reshape(B, S, H)
    out1 = source + ctx @ wo
    ln2 = layer_norm(out1)
    ffn = jnp.maximum(ln2 @ w1 + b1[0], 0.0) @ w2 + b2[0]
    return out1 + ffn


# ---------------------------------------------------------------------------
# main
# ---------------------------------------------------------------------------
if __name__ == "__main__":
    key = jax.random.PRNGKey(0)
    keys = jax.random.split(key, 12)

    source = jax.random.normal(keys[0], (B, S, H), jnp.float32)

    # padding mask: 1.0 at padded key positions, repeated along the query axis
    pad = jnp.array([[0, 0, 0, 0, 0, 0, 1, 1],
                     [0, 0, 0, 0, 0, 1, 1, 1]], jnp.float32)      # [B, S]
    source_mask = jnp.broadcast_to(pad[:, None, :], (B, S, S))    # [B, S, S]

    def winit(k, shape, scale=0.1):
        return scale * jax.random.normal(k, shape, jnp.float32)

    params = (
        jnp.ones((1, H), jnp.float32),          # LayerNorm gamma (shared, used twice)
        jnp.zeros((1, H), jnp.float32),         # LayerNorm beta
        winit(keys[1], (H, H)),                 # Wq (head-major columns, no bias)
        winit(keys[2], (H, H)),                 # Wk
        winit(keys[3], (H, H)),                 # Wv
        winit(keys[4], (H, H)),                 # Wo (no bias)
        winit(keys[5], (H, F)),                 # conv1 weight (k=1) -> [H, F]
        winit(keys[6], (1, F)),                 # conv1 bias
        winit(keys[7], (F, H)),                 # conv2 weight (k=1) -> [F, H]
        winit(keys[8], (1, H)),                 # conv2 bias
    )

    out = jax.block_until_ready(encoder_layer(source, source_mask, params))
    ref = encoder_layer_ref(source, source_mask, params)

    assert out.shape == (B, S, H)
    # tolerance accounts for the approximate EUP reciprocal used in the
    # in-kernel softmax (structural errors would be orders of magnitude larger)
    assert jnp.allclose(out, ref, rtol=5e-3, atol=5e-3), "mismatch vs reference"

    print("KERNEL_OK")
</pallas_src>

<mosaic_0001>
module attributes {stable_mosaic.version = 11 : i64} {
  func.func @encoder_layer_kernel(%arg0: memref<16x32xf32, #tpu.memory_space<vmem>>, %arg1: memref<8x8x8xf32, #tpu.memory_space<vmem>>, %arg2: memref<1x32xf32, #tpu.memory_space<vmem>>, %arg3: memref<1x32xf32, #tpu.memory_space<vmem>>, %arg4: memref<8x32x24xf32, #tpu.memory_space<vmem>>, %arg5: memref<8x8x32xf32, #tpu.memory_space<vmem>>, %arg6: memref<32x64xf32, #tpu.memory_space<vmem>>, %arg7: memref<1x64xf32, #tpu.memory_space<vmem>>, %arg8: memref<64x32xf32, #tpu.memory_space<vmem>>, %arg9: memref<1x32xf32, #tpu.memory_space<vmem>>, %arg10: memref<16x32xf32, #tpu.memory_space<vmem>>) attributes {dimension_semantics = [], scalar_prefetch = 0 : i64, scratch_operands = 0 : i64, tpu.core_type = #tpu.core_type<tc>} {
    %c0 = arith.constant 0 : index
    %c0_0 = arith.constant 0 : index
    %0 = vector.load %arg0[%c0, %c0_0] : memref<16x32xf32, #tpu.memory_space<vmem>>, vector<16x32xf32>
    %c0_1 = arith.constant 0 : index
    %c0_2 = arith.constant 0 : index
    %1 = vector.load %arg2[%c0_1, %c0_2] : memref<1x32xf32, #tpu.memory_space<vmem>>, vector<1x32xf32>
    %c0_3 = arith.constant 0 : index
    %c0_4 = arith.constant 0 : index
    %2 = vector.load %arg3[%c0_3, %c0_4] : memref<1x32xf32, #tpu.memory_space<vmem>>, vector<1x32xf32>
    %cst = arith.constant dense<0.000000e+00> : vector<16xf32>
    %3 = vector.multi_reduction <add>, %0, %cst [1] : vector<16x32xf32> to vector<16xf32>
    %4 = vector.shape_cast %3 : vector<16xf32> to vector<16x1xf32>
    %5 = arith.mulf %0, %0 : vector<16x32xf32>
    %cst_5 = arith.constant dense<0.000000e+00> : vector<16xf32>
    %6 = vector.multi_reduction <add>, %5, %cst_5 [1] : vector<16x32xf32> to vector<16xf32>
    %7 = vector.shape_cast %6 : vector<16xf32> to vector<16x1xf32>
    %cst_6 = arith.constant 3.125000e-02 : f32
    %8 = vector.broadcast %cst_6 : f32 to vector<16x1xf32>
    %9 = arith.mulf %4, %8 : vector<16x1xf32>
    %cst_7 = arith.constant 3.125000e-02 : f32
    %10 = vector.broadcast %cst_7 : f32 to vector<16x1xf32>
    %11 = arith.mulf %7, %10 : vector<16x1xf32>
    %12 = arith.mulf %9, %9 : vector<16x1xf32>
    %13 = arith.subf %11, %12 : vector<16x1xf32>
    %14 = vector.broadcast %9 : vector<16x1xf32> to vector<16x32xf32>
    %15 = arith.subf %0, %14 : vector<16x32xf32>
    %cst_8 = arith.constant 9.99999997E-7 : f32
    %16 = vector.broadcast %cst_8 : f32 to vector<16x1xf32>
    %17 = arith.addf %13, %16 : vector<16x1xf32>
    %18 = math.rsqrt %17 : vector<16x1xf32>
    %19 = vector.broadcast %18 : vector<16x1xf32> to vector<16x32xf32>
    %20 = arith.mulf %15, %19 : vector<16x32xf32>
    %21 = vector.broadcast %1 : vector<1x32xf32> to vector<16x32xf32>
    %22 = arith.mulf %20, %21 : vector<16x32xf32>
    %23 = vector.broadcast %2 : vector<1x32xf32> to vector<16x32xf32>
    %24 = arith.addf %22, %23 : vector<16x32xf32>
    %25 = vector.shape_cast %24 : vector<16x32xf32> to vector<1x16x32xf32>
    %26 = vector.broadcast %25 : vector<1x16x32xf32> to vector<4x16x32xf32>
    %27 = vector.shape_cast %26 : vector<4x16x32xf32> to vector<8x8x32xf32>
    %c0_9 = arith.constant 0 : index
    %c0_10 = arith.constant 0 : index
    %c0_11 = arith.constant 0 : index
    %28 = vector.load %arg4[%c0_9, %c0_10, %c0_11] : memref<8x32x24xf32, #tpu.memory_space<vmem>>, vector<8x32x24xf32>
    "tpu.trace_start"() <{level = 10 : i32, message = "gse,gef->gsf"}> : () -> ()
    %cst_12 = arith.constant dense<0.000000e+00> : vector<8x8x24xf32>
    %29 = tpu.matmul %27, %28, %cst_12 {dimension_numbers = #tpu.dot_dimension_numbers<[2], [1], [1], [2], [0, 0, 0, 1, 1, 2], [0], [0]>} : vector<8x8x32xf32>, vector<8x32x24xf32>, vector<8x8x24xf32> -> vector<8x8x24xf32>
    "tpu.trace_stop"() : () -> ()
    %30 = vector.extract_strided_slice %29 {offsets = [0, 0, 0], sizes = [8, 8, 8], strides = [1, 1, 1]} : vector<8x8x24xf32> to vector<8x8x8xf32>
    %cst_13 = arith.constant 0.353553385 : f32
    %31 = vector.broadcast %cst_13 : f32 to vector<8x8x8xf32>
    %32 = arith.mulf %30, %31 : vector<8x8x8xf32>
    %33 = vector.extract_strided_slice %29 {offsets = [0, 0, 8], sizes = [8, 8, 8], strides = [1, 1, 1]} : vector<8x8x24xf32> to vector<8x8x8xf32>
    %34 = vector.extract_strided_slice %29 {offsets = [0, 0, 16], sizes = [8, 8, 8], strides = [1, 1, 1]} : vector<8x8x24xf32> to vector<8x8x8xf32>
    "tpu.trace_start"() <{level = 10 : i32, message = "gqd,gkd->gqk"}> : () -> ()
    %cst_14 = arith.constant dense<0.000000e+00> : vector<8x8x8xf32>
    %35 = tpu.matmul %32, %33, %cst_14 {dimension_numbers = #tpu.dot_dimension_numbers<[2], [2], [1], [1], [0, 0, 0, 1, 1, 1], [0], [0]>} : vector<8x8x8xf32>, vector<8x8x8xf32>, vector<8x8x8xf32> -> vector<8x8x8xf32>
    "tpu.trace_stop"() : () -> ()
    %c0_15 = arith.constant 0 : index
    %c0_16 = arith.constant 0 : index
    %c0_17 = arith.constant 0 : index
    %36 = vector.load %arg1[%c0_15, %c0_16, %c0_17] : memref<8x8x8xf32, #tpu.memory_space<vmem>>, vector<8x8x8xf32>
    %cst_18 = arith.constant 0.000000e+00 : f32
    %37 = vector.broadcast %cst_18 : f32 to vector<8x8x8xf32>
    %38 = arith.cmpf ogt, %36, %37 : vector<8x8x8xf32>
    %cst_19 = arith.constant -1.000000e+30 : f32
    %39 = vector.broadcast %cst_19 : f32 to vector<8x8x8xf32>
    %40 = arith.select %38, %39, %35 : vector<8x8x8xi1>, vector<8x8x8xf32>
    %cst_20 = arith.constant dense<0xFF800000> : vector<8x8xf32>
    %41 = vector.multi_reduction <maximumf>, %40, %cst_20 [2] : vector<8x8x8xf32> to vector<8x8xf32>
    %42 = vector.shape_cast %41 : vector<8x8xf32> to vector<8x8x1xf32>
    %43 = vector.broadcast %42 : vector<8x8x1xf32> to vector<8x8x8xf32>
    %44 = arith.subf %40, %43 : vector<8x8x8xf32>
    %45 = math.exp %44 : vector<8x8x8xf32>
    %cst_21 = arith.constant dense<0.000000e+00> : vector<8x8xf32>
    %46 = vector.multi_reduction <add>, %45, %cst_21 [2] : vector<8x8x8xf32> to vector<8x8xf32>
    %47 = vector.shape_cast %46 : vector<8x8xf32> to vector<8x8x1xf32>
    %48 = tpu.reciprocal %47 {approx = true} : vector<8x8x1xf32> -> vector<8x8x1xf32>
    %49 = vector.broadcast %48 : vector<8x8x1xf32> to vector<8x8x8xf32>
    %50 = arith.mulf %45, %49 : vector<8x8x8xf32>
    "tpu.trace_start"() <{level = 10 : i32, message = "gqk,gkd->gqd"}> : () -> ()
    %cst_22 = arith.constant dense<0.000000e+00> : vector<8x8x8xf32>
    %51 = tpu.matmul %50, %34, %cst_22 {dimension_numbers = #tpu.dot_dimension_numbers<[2], [1], [1], [2], [0, 0, 0, 1, 1, 2], [0], [0]>} : vector<8x8x8xf32>, vector<8x8x8xf32>, vector<8x8x8xf32> -> vector<8x8x8xf32>
    "tpu.trace_stop"() : () -> ()
    %c0_23 = arith.constant 0 : index
    %c0_24 = arith.constant 0 : index
    %c0_25 = arith.constant 0 : index
    %52 = vector.load %arg5[%c0_23, %c0_24, %c0_25] : memref<8x8x32xf32, #tpu.memory_space<vmem>>, vector<8x8x32xf32>
    "tpu.trace_start"() <{level = 10 : i32, message = "gsd,gdh->gsh"}> : () -> ()
    %cst_26 = arith.constant dense<0.000000e+00> : vector<8x8x32xf32>
    %53 = tpu.matmul %51, %52, %cst_26 {dimension_numbers = #tpu.dot_dimension_numbers<[2], [1], [1], [2], [0, 0, 0, 1, 1, 2], [0], [0]>} : vector<8x8x8xf32>, vector<8x8x32xf32>, vector<8x8x32xf32> -> vector<8x8x32xf32>
    "tpu.trace_stop"() : () -> ()
    %54 = vector.shape_cast %53 : vector<8x8x32xf32> to vector<4x16x32xf32>
    %cst_27 = arith.constant dense<0.000000e+00> : vector<16x32xf32>
    %55 = vector.multi_reduction <add>, %54, %cst_27 [0] : vector<4x16x32xf32> to vector<16x32xf32>
    %56 = arith.addf %0, %55 : vector<16x32xf32>
    %cst_28 = arith.constant dense<0.000000e+00> : vector<16xf32>
    %57 = vector.multi_reduction <add>, %56, %cst_28 [1] : vector<16x32xf32> to vector<16xf32>
    %58 = vector.shape_cast %57 : vector<16xf32> to vector<16x1xf32>
    %59 = arith.mulf %56, %56 : vector<16x32xf32>
    %cst_29 = arith.constant dense<0.000000e+00> : vector<16xf32>
    %60 = vector.multi_reduction <add>, %59, %cst_29 [1] : vector<16x32xf32> to vector<16xf32>
    %61 = vector.shape_cast %60 : vector<16xf32> to vector<16x1xf32>
    %cst_30 = arith.constant 3.125000e-02 : f32
    %62 = vector.broadcast %cst_30 : f32 to vector<16x1xf32>
    %63 = arith.mulf %58, %62 : vector<16x1xf32>
    %cst_31 = arith.constant 3.125000e-02 : f32
    %64 = vector.broadcast %cst_31 : f32 to vector<16x1xf32>
    %65 = arith.mulf %61, %64 : vector<16x1xf32>
    %66 = arith.mulf %63, %63 : vector<16x1xf32>
    %67 = arith.subf %65, %66 : vector<16x1xf32>
    %68 = vector.broadcast %63 : vector<16x1xf32> to vector<16x32xf32>
    %69 = arith.subf %56, %68 : vector<16x32xf32>
    %cst_32 = arith.constant 9.99999997E-7 : f32
    %70 = vector.broadcast %cst_32 : f32 to vector<16x1xf32>
    %71 = arith.addf %67, %70 : vector<16x1xf32>
    %72 = math.rsqrt %71 : vector<16x1xf32>
    %73 = vector.broadcast %72 : vector<16x1xf32> to vector<16x32xf32>
    %74 = arith.mulf %69, %73 : vector<16x32xf32>
    %75 = vector.broadcast %1 : vector<1x32xf32> to vector<16x32xf32>
    %76 = arith.mulf %74, %75 : vector<16x32xf32>
    %77 = vector.broadcast %2 : vector<1x32xf32> to vector<16x32xf32>
    %78 = arith.addf %76, %77 : vector<16x32xf32>
    %c0_33 = arith.constant 0 : index
    %c0_34 = arith.constant 0 : index
    %79 = vector.load %arg6[%c0_33, %c0_34] : memref<32x64xf32, #tpu.memory_space<vmem>>, vector<32x64xf32>
    %cst_35 = arith.constant dense<0.000000e+00> : vector<16x64xf32>
    %80 = tpu.matmul %78, %79, %cst_35 {dimension_numbers = #tpu.dot_dimension_numbers<[1], [0], [0], [1], [0, 0, 1, 1], [], []>} : vector<16x32xf32>, vector<32x64xf32>, vector<16x64xf32> -> vector<16x64xf32>
    %c0_36 = arith.constant 0 : index
    %c0_37 = arith.constant 0 : index
    %81 = vector.load %arg7[%c0_36, %c0_37] : memref<1x64xf32, #tpu.memory_space<vmem>>, vector<1x64xf32>
    %82 = vector.broadcast %81 : vector<1x64xf32> to vector<16x64xf32>
    %83 = arith.addf %80, %82 : vector<16x64xf32>
    %cst_38 = arith.constant 0.000000e+00 : f32
    %84 = vector.broadcast %cst_38 : f32 to vector<16x64xf32>
    %85 = arith.maximumf %83, %84 : vector<16x64xf32>
    %c0_39 = arith.constant 0 : index
    %c0_40 = arith.constant 0 : index
    %86 = vector.load %arg8[%c0_39, %c0_40] : memref<64x32xf32, #tpu.memory_space<vmem>>, vector<64x32xf32>
    %cst_41 = arith.constant dense<0.000000e+00> : vector<16x32xf32>
    %87 = tpu.matmul %85, %86, %cst_41 {dimension_numbers = #tpu.dot_dimension_numbers<[1], [0], [0], [1], [0, 0, 1, 1], [], []>} : vector<16x64xf32>, vector<64x32xf32>, vector<16x32xf32> -> vector<16x32xf32>
    %c0_42 = arith.constant 0 : index
    %c0_43 = arith.constant 0 : index
    %88 = vector.load %arg9[%c0_42, %c0_43] : memref<1x32xf32, #tpu.memory_space<vmem>>, vector<1x32xf32>
    %89 = vector.broadcast %88 : vector<1x32xf32> to vector<16x32xf32>
    %90 = arith.addf %87, %89 : vector<16x32xf32>
    %91 = arith.addf %56, %90 : vector<16x32xf32>
    %c0_44 = arith.constant 0 : index
    %c0_45 = arith.constant 0 : index
    %92 = vector.load %arg10[%c0_44, %c0_45] : memref<16x32xf32, #tpu.memory_space<vmem>>, vector<16x32xf32>
    tpu.vector_store %arg10[%c0_44, %c0_45], %91 {strides = array<i32>} : memref<16x32xf32, #tpu.memory_space<vmem>>, vector<16x32xf32>,
    return
  }
}

</mosaic_0001>

<llo_original>
// kernel: tpu_custom_call.1
$region0: #{tpu_custom_call.1}
  #allocation0 [shape = 'u32[]', space=smem, size = 0x4, offset = 0x4, fixed_abs, tag = 'smem constant byte address 0x4 - core index']
  #allocation1 [shape = 'u32[144,128]{1,0:T(1,128)}', space=vmem, size = 0x12000, scoped, tag = 'internal scratch']
  %s0 = inlined_call_operand.vmem [shape: f32[16,32], index: 0, kind: input, shape index: {}]
  %s1 = inlined_call_operand.vmem [shape: f32[8,8,8], index: 1, kind: input, shape index: {}]
  %s2 = inlined_call_operand.vmem [shape: f32[1,32], index: 2, kind: input, shape index: {}]
  %s3 = inlined_call_operand.vmem [shape: f32[1,32], index: 3, kind: input, shape index: {}]
  %s4 = inlined_call_operand.vmem [shape: f32[8,32,24], index: 4, kind: input, shape index: {}]
  %s5 = inlined_call_operand.vmem [shape: f32[8,8,32], index: 5, kind: input, shape index: {}]
  %s6 = inlined_call_operand.vmem [shape: f32[32,64], index: 6, kind: input, shape index: {}]
  %s7 = inlined_call_operand.vmem [shape: f32[1,64], index: 7, kind: input, shape index: {}]
  %s8 = inlined_call_operand.vmem [shape: f32[64,32], index: 8, kind: input, shape index: {}]
  %s9 = inlined_call_operand.vmem [shape: f32[1,32], index: 9, kind: input, shape index: {}]
  %s10 = inlined_call_operand.hbm [shape: f32[16,32], index: 10, kind: output, shape index: {}]
  %s11 = sld [smem:[#allocation0]]
  $region50: #{tpu_custom_call.1} parent=0
    _
  %s13 = ssub.s32 1, %s11
  %s14 = scalar_select 0, %s13, %s11
  $region1: #{tpu_custom_call.1} parent=0
    #allocation2 [shape = 'u8[8192]{0}', space=vmem, size = 0x2000, scoped, tag = 'output window, operand 0, single buffered']
    #allocation3 [shape = 's32[1]{0}', space=sflag, size = 0x4, scoped, tag = 'scoped memory for tpu_custom_call.1']
    %15 = vsyncpa [#allocation3], 0
    // Predicated region
    $region2: #{tpu_custom_call.1} parent=1 // pred_check
      _
    $region3: #{tpu_custom_call.1} parent=1 // pred_check_branch
      %17 = sbr.rel (0) target = $region5
    $region4: #{tpu_custom_call.1} parent=1 // pred_region
      _
    $region5: #{tpu_custom_call.1} parent=1 // pred_fallthru
      _
    // Predicated region
    $region6: #{tpu_custom_call.1} parent=1 // pred_check
      _
    $region7: #{tpu_custom_call.1} parent=1 // pred_check_branch
      %19 = sbr.rel (0) target = $region9
    $region8: #{tpu_custom_call.1} parent=1 // pred_region
      _
    $region9: #{tpu_custom_call.1} parent=1 // pred_fallthru
      _
    // Predicated region
    $region10: #{tpu_custom_call.1} parent=1 // pred_check
      _
    $region11: #{tpu_custom_call.1} parent=1 // pred_check_branch
      %21 = sbr.rel (0) target = $region13
    $region12: #{tpu_custom_call.1} parent=1 // pred_region
      _
    $region13: #{tpu_custom_call.1} parent=1 // pred_fallthru
      _
    // Predicated region
    $region14: #{tpu_custom_call.1} parent=1 // pred_check
      _
    $region15: #{tpu_custom_call.1} parent=1 // pred_check_branch
      %23 = sbr.rel (0) target = $region17
    $region16: #{tpu_custom_call.1} parent=1 // pred_region
      _
    $region17: #{tpu_custom_call.1} parent=1 // pred_fallthru
      _
    // Predicated region
    $region18: #{tpu_custom_call.1} parent=1 // pred_check
      _
    $region19: #{tpu_custom_call.1} parent=1 // pred_check_branch
      %25 = sbr.rel (0) target = $region21
    $region20: #{tpu_custom_call.1} parent=1 // pred_region
      _
    $region21: #{tpu_custom_call.1} parent=1 // pred_fallthru
      _
    // Predicated region
    $region22: #{tpu_custom_call.1} parent=1 // pred_check
      _
    $region23: #{tpu_custom_call.1} parent=1 // pred_check_branch
      %27 = sbr.rel (0) target = $region25
    $region24: #{tpu_custom_call.1} parent=1 // pred_region
      _
    $region25: #{tpu_custom_call.1} parent=1 // pred_fallthru
      _
    // Predicated region
    $region26: #{tpu_custom_call.1} parent=1 // pred_check
      _
    $region27: #{tpu_custom_call.1} parent=1 // pred_check_branch
      %29 = sbr.rel (0) target = $region29
    $region28: #{tpu_custom_call.1} parent=1 // pred_region
      _
    $region29: #{tpu_custom_call.1} parent=1 // pred_fallthru
      _
    // Predicated region
    $region30: #{tpu_custom_call.1} parent=1 // pred_check
      _
    $region31: #{tpu_custom_call.1} parent=1 // pred_check_branch
      %31 = sbr.rel (0) target = $region33
    $region32: #{tpu_custom_call.1} parent=1 // pred_region
      _
    $region33: #{tpu_custom_call.1} parent=1 // pred_fallthru
      _
    // Predicated region
    $region34: #{tpu_custom_call.1} parent=1 // pred_check
      _
    $region35: #{tpu_custom_call.1} parent=1 // pred_check_branch
      %33 = sbr.rel (0) target = $region37
    $region36: #{tpu_custom_call.1} parent=1 // pred_region
      _
    $region37: #{tpu_custom_call.1} parent=1 // pred_fallthru
      _
    // Predicated region
    $region38: #{tpu_custom_call.1} parent=1 // pred_check
      _
    $region39: #{tpu_custom_call.1} parent=1 // pred_check_branch
      %35 = sbr.rel (0) target = $region41
    $region40: #{tpu_custom_call.1} parent=1 // pred_region
      _
    $region41: #{tpu_custom_call.1} parent=1 // pred_fallthru
      _
    %v36 = vld [vmem:[%s0] sm:$0xff]
    %v37 = vld [vmem:[%s0 + $0x8] sm:$0xff]
    %v38 = vld [vmem:[%s2] sm:$0x1]
    %v39 = vld [vmem:[%s3] sm:$0x1]
    %vm40 = vcmask 261120
    %v41 = vsel %vm40, %v36, 0.0
    %42 = vadd.xlane.f32.xlu0 %v41
    %v43 = vpop.xlane.xlu0 %42
    %v44 = vsel %vm40, %v37, 0.0
    %45 = vadd.xlane.f32.xlu0 %v44
    %v46 = vpop.xlane.xlu0 %45
    %v47 = vmul.f32 %v36, %v36
    %v48 = vmul.f32 %v37, %v37
    %v49 = vsel %vm40, %v47, 0.0
    %50 = vadd.xlane.f32.xlu0 %v49
    %v51 = vpop.xlane.xlu0 %50
    %v52 = vsel %vm40, %v48, 0.0
    %53 = vadd.xlane.f32.xlu0 %v52
    %v54 = vpop.xlane.xlu0 %53
    %v55 = vmul.f32 %v43, 0.03125
    %v56 = vmul.f32 %v46, 0.03125
    %v57 = vmul.f32 %v51, 0.03125
    %v58 = vmul.f32 %v54, 0.03125
    %v59 = vmul.f32 %v55, %v55
    %v60 = vmul.f32 %v56, %v56
    %v61 = vsub.f32 %v57, %v59
    %v62 = vsub.f32 %v58, %v60
    %v63 = vsub.f32 %v36, %v55
    %v64 = vsub.f32 %v37, %v56
    %v65 = vadd.f32 %v61, 1e-06
    %v66 = vadd.f32 %v62, 1e-06
    %v67 = vrsqrt.pop %v65
    %v68 = vrsqrt.pop %v66
    %v69 = vmul.f32 %v63, %v67
    %v70 = vmul.f32 %v64, %v68
    %v72 = vlaneseq
    %v73 = vshrl.u32 %v72, 7
    %v74 = vsub.s32 0, %v73
    %v75 = vrot.slane %v38, %v74
    %v77 = vmul.f32 %v69, %v75
    %v78 = vmul.f32 %v70, %v75
    %v80 = vlaneseq
    %v81 = vshrl.u32 %v80, 7
    %v82 = vsub.s32 0, %v81
    %v83 = vrot.slane %v39, %v82
    %v85 = vadd.f32 %v77, %v83
    %v86 = vadd.f32 %v78, %v83
    %v87 = vld [vmem:[%s4] sm:$0xff]
    %v88 = vld [vmem:[%s4 + $0x8] sm:$0xff]
    %v89 = vld [vmem:[%s4 + $0x10] sm:$0xff]
    %v90 = vld [vmem:[%s4 + $0x18] sm:$0xff]
    %v91 = vld [vmem:[%s4 + $0x20] sm:$0xff]
    %v92 = vld [vmem:[%s4 + $0x28] sm:$0xff]
    %v93 = vld [vmem:[%s4 + $0x30] sm:$0xff]
    %v94 = vld [vmem:[%s4 + $0x38] sm:$0xff]
    %v95 = vld [vmem:[%s4 + $0x40] sm:$0xff]
    %v96 = vld [vmem:[%s4 + $0x48] sm:$0xff]
    %v97 = vld [vmem:[%s4 + $0x50] sm:$0xff]
    %v98 = vld [vmem:[%s4 + $0x58] sm:$0xff]
    %v99 = vld [vmem:[%s4 + $0x60] sm:$0xff]
    %v100 = vld [vmem:[%s4 + $0x68] sm:$0xff]
    %v101 = vld [vmem:[%s4 + $0x70] sm:$0xff]
    %v102 = vld [vmem:[%s4 + $0x78] sm:$0xff]
    %v103 = vld [vmem:[%s4 + $0x80] sm:$0xff]
    %v104 = vld [vmem:[%s4 + $0x88] sm:$0xff]
    %v105 = vld [vmem:[%s4 + $0x90] sm:$0xff]
    %v106 = vld [vmem:[%s4 + $0x98] sm:$0xff]
    %v107 = vld [vmem:[%s4 + $0xa0] sm:$0xff]
    %v108 = vld [vmem:[%s4 + $0xa8] sm:$0xff]
    %v109 = vld [vmem:[%s4 + $0xb0] sm:$0xff]
    %v110 = vld [vmem:[%s4 + $0xb8] sm:$0xff]
    %v111 = vld [vmem:[%s4 + $0xc0] sm:$0xff]
    %v112 = vld [vmem:[%s4 + $0xc8] sm:$0xff]
    %v113 = vld [vmem:[%s4 + $0xd0] sm:$0xff]
    %v114 = vld [vmem:[%s4 + $0xd8] sm:$0xff]
    %v115 = vld [vmem:[%s4 + $0xe0] sm:$0xff]
    %v116 = vld [vmem:[%s4 + $0xe8] sm:$0xff]
    %v117 = vld [vmem:[%s4 + $0xf0] sm:$0xff]
    %v118 = vld [vmem:[%s4 + $0xf8] sm:$0xff]
    %v120 = vsel %vm40, %v85, 0
    %122 = vmatprep.subr.mxu0 0.0
    %123 = vmatpush1.msra.mxu0 0.0
    %124 = vmatprep.subr.mxu0 0.0
    %125 = vmatpush1.msra.mxu0 0.0
    %126 = vmatprep.subr.mxu0 0.0
    %127 = vmatpush1.msra.mxu0 0.0
    %128 = vmatprep.subr.mxu0 0.0
    %129 = vmatpush1.msra.mxu0 0.0
    %130 = vmatprep.subr.mxu0 0.0
    %131 = vmatpush1.msra.mxu0 0.0
    %132 = vmatprep.subr.mxu0 0.0
    %133 = vmatpush1.msra.mxu0 0.0
    %134 = vmatprep.subr.mxu0 0.0
    %135 = vmatpush1.msra.mxu0 0.0
    %136 = vmatprep.subr.mxu0 0.0
    %137 = vmatpush1.msra.mxu0 0.0
    %138 = vmatprep.subr.mxu0 0.0
    %139 = vmatpush1.msra.mxu0 0.0
    %140 = vmatprep.subr.mxu0 0.0
    %141 = vmatpush1.msra.mxu0 0.0
    %142 = vmatprep.subr.mxu0 0.0
    %143 = vmatpush1.msra.mxu0 0.0
    %144 = vmatprep.subr.mxu0 0.0
    %145 = vmatpush1.msra.mxu0 0.0
    %146 = vmatprep.subr.mxu0 0.0
    %147 = vmatpush1.msra.mxu0 %v90
    %148 = vmatprep.subr.mxu0 0.0
    %149 = vmatpush1.msra.mxu0 %v89
    %150 = vmatprep.subr.mxu0 0.0
    %151 = vmatpush1.msra.mxu0 %v88
    %152 = vmatprep.subr.mxu0 0.0
    %153 = vmatpush1.msra.mxu0 %v87
    %154 = vmatprep.subr.mxu0 0.0
    %155 = vmatpush2.msra.mxu0 0.0
    %156 = vmatprep.subr.mxu0 0.0
    %157 = vmatpush2.msra.mxu0 0.0
    %158 = vmatprep.subr.mxu0 0.0
    %159 = vmatpush2.msra.mxu0 0.0
    %160 = vmatprep.subr.mxu0 0.0
    %161 = vmatpush2.msra.mxu0 0.0
    %162 = vmatprep.subr.mxu0 0.0
    %163 = vmatpush2.msra.mxu0 0.0
    %164 = vmatprep.subr.mxu0 0.0
    %165 = vmatpush2.msra.mxu0 0.0
    %166 = vmatprep.subr.mxu0 0.0
    %167 = vmatpush2.msra.mxu0 0.0
    %168 = vmatprep.subr.mxu0 0.0
    %169 = vmatpush2.msra.mxu0 0.0
    %170 = vmatprep.subr.mxu0 0.0
    %171 = vmatpush2.msra.mxu0 0.0
    %172 = vmatprep.subr.mxu0 0.0
    %173 = vmatpush2.msra.mxu0 0.0
    %174 = vmatprep.subr.mxu0 0.0
    %175 = vmatpush2.msra.mxu0 0.0
    %176 = vmatprep.subr.mxu0 0.0
    %177 = vmatpush2.msra.mxu0 0.0
    %178 = vmatprep.subr.mxu0 0.0
    %179 = vmatpush2.msra.mxu0 0.0
    %180 = vmatprep.subr.mxu0 0.0
    %181 = vmatpush2.msra.mxu0 0.0
    %182 = vmatprep.subr.mxu0 0.0
    %183 = vmatpush2.msra.mxu0 0.0
    %184 = vmatprep.subr.mxu0 0.0
    %185 = vmatpush2.msra.mxu0 0.0
    %186 = vmatprep.mubr.f32.mxu0 0.0
    %187 = vmatmul.mubr.f32.gmra.mxu0 %v120
    %v188 = vpop.f32.mrf.mxu0
    %v189 = vadd.f32 0.0, %v188
    %v190 = vpop.f32.mrf.mxu0
    %191 = vdwg.mxu0
    %v193 = vsel %vm40, %v86, 0
    %195 = vmatprep.subr.mxu0 0.0
    %196 = vmatpush1.msra.mxu0 0.0
    %197 = vmatprep.subr.mxu0 0.0
    %198 = vmatpush1.msra.mxu0 0.0
    %199 = vmatprep.subr.mxu0 0.0
    %200 = vmatpush1.msra.mxu0 0.0
    %201 = vmatprep.subr.mxu0 0.0
    %202 = vmatpush1.msra.mxu0 0.0
    %203 = vmatprep.subr.mxu0 0.0
    %204 = vmatpush1.msra.mxu0 0.0
    %205 = vmatprep.subr.mxu0 0.0
    %206 = vmatpush1.msra.mxu0 0.0
    %207 = vmatprep.subr.mxu0 0.0
    %208 = vmatpush1.msra.mxu0 0.0
    %209 = vmatprep.subr.mxu0 0.0
    %210 = vmatpush1.msra.mxu0 0.0
    %211 = vmatprep.subr.mxu0 0.0
    %212 = vmatpush1.msra.mxu0 0.0
    %213 = vmatprep.subr.mxu0 0.0
    %214 = vmatpush1.msra.mxu0 0.0
    %215 = vmatprep.subr.mxu0 0.0
    %216 = vmatpush1.msra.mxu0 0.0
    %217 = vmatprep.subr.mxu0 0.0
    %218 = vmatpush1.msra.mxu0 0.0
    %219 = vmatprep.subr.mxu0 0.0
    %220 = vmatpush1.msra.mxu0 %v94
    %221 = vmatprep.subr.mxu0 0.0
    %222 = vmatpush1.msra.mxu0 %v93
    %223 = vmatprep.subr.mxu0 0.0
    %224 = vmatpush1.msra.mxu0 %v92
    %225 = vmatprep.subr.mxu0 0.0
    %226 = vmatpush1.msra.mxu0 %v91
    %227 = vmatprep.subr.mxu0 0.0
    %228 = vmatpush2.msra.mxu0 0.0
    %229 = vmatprep.subr.mxu0 0.0
    %230 = vmatpush2.msra.mxu0 0.0
    %231 = vmatprep.subr.mxu0 0.0
    %232 = vmatpush2.msra.mxu0 0.0
    %233 = vmatprep.subr.mxu0 0.0
    %234 = vmatpush2.msra.mxu0 0.0
    %235 = vmatprep.subr.mxu0 0.0
    %236 = vmatpush2.msra.mxu0 0.0
    %237 = vmatprep.subr.mxu0 0.0
    %238 = vmatpush2.msra.mxu0 0.0
    %239 = vmatprep.subr.mxu0 0.0
    %240 = vmatpush2.msra.mxu0 0.0
    %241 = vmatprep.subr.mxu0 0.0
    %242 = vmatpush2.msra.mxu0 0.0
    %243 = vmatprep.subr.mxu0 0.0
    %244 = vmatpush2.msra.mxu0 0.0
    %245 = vmatprep.subr.mxu0 0.0
    %246 = vmatpush2.msra.mxu0 0.0
    %247 = vmatprep.subr.mxu0 0.0
    %248 = vmatpush2.msra.mxu0 0.0
    %249 = vmatprep.subr.mxu0 0.0
    %250 = vmatpush2.msra.mxu0 0.0
    %251 = vmatprep.subr.mxu0 0.0
    %252 = vmatpush2.msra.mxu0 0.0
    %253 = vmatprep.subr.mxu0 0.0
    %254 = vmatpush2.msra.mxu0 0.0
    %255 = vmatprep.subr.mxu0 0.0
    %256 = vmatpush2.msra.mxu0 0.0
    %257 = vmatprep.subr.mxu0 0.0
    %258 = vmatpush2.msra.mxu0 0.0
    %259 = vmatprep.mubr.f32.mxu0 0.0
    %260 = vmatmul.mubr.f32.gmra.mxu0 %v193
    %v261 = vpop.f32.mrf.mxu0
    %v262 = vadd.f32 0.0, %v261
    %v263 = vpop.f32.mrf.mxu0
    %264 = vdwg.mxu0
    %265 = vmatprep.subr.mxu0 0.0
    %266 = vmatpush1.msra.mxu0 0.0
    %267 = vmatprep.subr.mxu0 0.0
    %268 = vmatpush1.msra.mxu0 0.0
    %269 = vmatprep.subr.mxu0 0.0
    %270 = vmatpush1.msra.mxu0 0.0
    %271 = vmatprep.subr.mxu0 0.0
    %272 = vmatpush1.msra.mxu0 0.0
    %273 = vmatprep.subr.mxu0 0.0
    %274 = vmatpush1.msra.mxu0 0.0
    %275 = vmatprep.subr.mxu0 0.0
    %276 = vmatpush1.msra.mxu0 0.0
    %277 = vmatprep.subr.mxu0 0.0
    %278 = vmatpush1.msra.mxu0 0.0
    %279 = vmatprep.subr.mxu0 0.0
    %280 = vmatpush1.msra.mxu0 0.0
    %281 = vmatprep.subr.mxu0 0.0
    %282 = vmatpush1.msra.mxu0 0.0
    %283 = vmatprep.subr.mxu0 0.0
    %284 = vmatpush1.msra.mxu0 0.0
    %285 = vmatprep.subr.mxu0 0.0
    %286 = vmatpush1.msra.mxu0 0.0
    %287 = vmatprep.subr.mxu0 0.0
    %288 = vmatpush1.msra.mxu0 0.0
    %289 = vmatprep.subr.mxu0 0.0
    %290 = vmatpush1.msra.mxu0 %v98
    %291 = vmatprep.subr.mxu0 0.0
    %292 = vmatpush1.msra.mxu0 %v97
    %293 = vmatprep.subr.mxu0 0.0
    %294 = vmatpush1.msra.mxu0 %v96
    %295 = vmatprep.subr.mxu0 0.0
    %296 = vmatpush1.msra.mxu0 %v95
    %297 = vmatprep.subr.mxu0 0.0
    %298 = vmatpush2.msra.mxu0 0.0
    %299 = vmatprep.subr.mxu0 0.0
    %300 = vmatpush2.msra.mxu0 0.0
    %301 = vmatprep.subr.mxu0 0.0
    %302 = vmatpush2.msra.mxu0 0.0
    %303 = vmatprep.subr.mxu0 0.0
    %304 = vmatpush2.msra.mxu0 0.0
    %305 = vmatprep.subr.mxu0 0.0
    %306 = vmatpush2.msra.mxu0 0.0
    %307 = vmatprep.subr.mxu0 0.0
    %308 = vmatpush2.msra.mxu0 0.0
    %309 = vmatprep.subr.mxu0 0.0
    %310 = vmatpush2.msra.mxu0 0.0
    %311 = vmatprep.subr.mxu0 0.0
    %312 = vmatpush2.msra.mxu0 0.0
    %313 = vmatprep.subr.mxu0 0.0
    %314 = vmatpush2.msra.mxu0 0.0
    %315 = vmatprep.subr.mxu0 0.0
    %316 = vmatpush2.msra.mxu0 0.0
    %317 = vmatprep.subr.mxu0 0.0
    %318 = vmatpush2.msra.mxu0 0.0
    %319 = vmatprep.subr.mxu0 0.0
    %320 = vmatpush2.msra.mxu0 0.0
    %321 = vmatprep.subr.mxu0 0.0
    %322 = vmatpush2.msra.mxu0 0.0
    %323 = vmatprep.subr.mxu0 0.0
    %324 = vmatpush2.msra.mxu0 0.0
    %325 = vmatprep.subr.mxu0 0.0
    %326 = vmatpush2.msra.mxu0 0.0
    %327 = vmatprep.subr.mxu0 0.0
    %328 = vmatpush2.msra.mxu0 0.0
    %329 = vmatprep.mubr.f32.mxu0 0.0
    %330 = vmatmul.mubr.f32.gmra.mxu0 %v120
    %v331 = vpop.f32.mrf.mxu0
    %v332 = vadd.f32 0.0, %v331
    %v333 = vpop.f32.mrf.mxu0
    %334 = vdwg.mxu0
    %335 = vmatprep.subr.mxu0 0.0
    %336 = vmatpush1.msra.mxu0 0.0
    %337 = vmatprep.subr.mxu0 0.0
    %338 = vmatpush1.msra.mxu0 0.0
    %339 = vmatprep.subr.mxu0 0.0
    %340 = vmatpush1.msra.mxu0 0.0
    %341 = vmatprep.subr.mxu0 0.0
    %342 = vmatpush1.msra.mxu0 0.0
    %343 = vmatprep.subr.mxu0 0.0
    %344 = vmatpush1.msra.mxu0 0.0
    %345 = vmatprep.subr.mxu0 0.0
    %346 = vmatpush1.msra.mxu0 0.0
    %347 = vmatprep.subr.mxu0 0.0
    %348 = vmatpush1.msra.mxu0 0.0
    %349 = vmatprep.subr.mxu0 0.0
    %350 = vmatpush1.msra.mxu0 0.0
    %351 = vmatprep.subr.mxu0 0.0
    %352 = vmatpush1.msra.mxu0 0.0
    %353 = vmatprep.subr.mxu0 0.0
    %354 = vmatpush1.msra.mxu0 0.0
    %355 = vmatprep.subr.mxu0 0.0
    %356 = vmatpush1.msra.mxu0 0.0
    %357 = vmatprep.subr.mxu0 0.0
    %358 = vmatpush1.msra.mxu0 0.0
    %359 = vmatprep.subr.mxu0 0.0
    %360 = vmatpush1.msra.mxu0 %v102
    %361 = vmatprep.subr.mxu0 0.0
    %362 = vmatpush1.msra.mxu0 %v101
    %363 = vmatprep.subr.mxu0 0.0
    %364 = vmatpush1.msra.mxu0 %v100
    %365 = vmatprep.subr.mxu0 0.0
    %366 = vmatpush1.msra.mxu0 %v99
    %367 = vmatprep.subr.mxu0 0.0
    %368 = vmatpush2.msra.mxu0 0.0
    %369 = vmatprep.subr.mxu0 0.0
    %370 = vmatpush2.msra.mxu0 0.0
    %371 = vmatprep.subr.mxu0 0.0
    %372 = vmatpush2.msra.mxu0 0.0
    %373 = vmatprep.subr.mxu0 0.0
    %374 = vmatpush2.msra.mxu0 0.0
    %375 = vmatprep.subr.mxu0 0.0
    %376 = vmatpush2.msra.mxu0 0.0
    %377 = vmatprep.subr.mxu0 0.0
    %378 = vmatpush2.msra.mxu0 0.0
    %379 = vmatprep.subr.mxu0 0.0
    %380 = vmatpush2.msra.mxu0 0.0
    %381 = vmatprep.subr.mxu0 0.0
    %382 = vmatpush2.msra.mxu0 0.0
    %383 = vmatprep.subr.mxu0 0.0
    %384 = vmatpush2.msra.mxu0 0.0
    %385 = vmatprep.subr.mxu0 0.0
    %386 = vmatpush2.msra.mxu0 0.0
    %387 = vmatprep.subr.mxu0 0.0
    %388 = vmatpush2.msra.mxu0 0.0
    %389 = vmatprep.subr.mxu0 0.0
    %390 = vmatpush2.msra.mxu0 0.0
    %391 = vmatprep.subr.mxu0 0.0
    %392 = vmatpush2.msra.mxu0 0.0
    %393 = vmatprep.subr.mxu0 0.0
    %394 = vmatpush2.msra.mxu0 0.0
    %395 = vmatprep.subr.mxu0 0.0
    %396 = vmatpush2.msra.mxu0 0.0
    %397 = vmatprep.subr.mxu0 0.0
    %398 = vmatpush2.msra.mxu0 0.0
    %399 = vmatprep.mubr.f32.mxu0 0.0
    %400 = vmatmul.mubr.f32.gmra.mxu0 %v193
    %v401 = vpop.f32.mrf.mxu0
    %v402 = vadd.f32 0.0, %v401
    %v403 = vpop.f32.mrf.mxu0
    %404 = vdwg.mxu0
    %405 = vmatprep.subr.mxu0 0.0
    %406 = vmatpush1.msra.mxu0 0.0
    %407 = vmatprep.subr.mxu0 0.0
    %408 = vmatpush1.msra.mxu0 0.0
    %409 = vmatprep.subr.mxu0 0.0
    %410 = vmatpush1.msra.mxu0 0.0
    %411 = vmatprep.subr.mxu0 0.0
    %412 = vmatpush1.msra.mxu0 0.0
    %413 = vmatprep.subr.mxu0 0.0
    %414 = vmatpush1.msra.mxu0 0.0
    %415 = vmatprep.subr.mxu0 0.0
    %416 = vmatpush1.msra.mxu0 0.0
    %417 = vmatprep.subr.mxu0 0.0
    %418 = vmatpush1.msra.mxu0 0.0
    %419 = vmatprep.subr.mxu0 0.0
    %420 = vmatpush1.msra.mxu0 0.0
    %421 = vmatprep.subr.mxu0 0.0
    %422 = vmatpush1.msra.mxu0 0.0
    %423 = vmatprep.subr.mxu0 0.0
    %424 = vmatpush1.msra.mxu0 0.0
    %425 = vmatprep.subr.mxu0 0.0
    %426 = vmatpush1.msra.mxu0 0.0
    %427 = vmatprep.subr.mxu0 0.0
    %428 = vmatpush1.msra.mxu0 0.0
    %429 = vmatprep.subr.mxu0 0.0
    %430 = vmatpush1.msra.mxu0 %v106
    %431 = vmatprep.subr.mxu0 0.0
    %432 = vmatpush1.msra.mxu0 %v105
    %433 = vmatprep.subr.mxu0 0.0
    %434 = vmatpush1.msra.mxu0 %v104
    %435 = vmatprep.subr.mxu0 0.0
    %436 = vmatpush1.msra.mxu0 %v103
    %437 = vmatprep.subr.mxu0 0.0
    %438 = vmatpush2.msra.mxu0 0.0
    %439 = vmatprep.subr.mxu0 0.0
    %440 = vmatpush2.msra.mxu0 0.0
    %441 = vmatprep.subr.mxu0 0.0
    %442 = vmatpush2.msra.mxu0 0.0
    %443 = vmatprep.subr.mxu0 0.0
    %444 = vmatpush2.msra.mxu0 0.0
    %445 = vmatprep.subr.mxu0 0.0
    %446 = vmatpush2.msra.mxu0 0.0
    %447 = vmatprep.subr.mxu0 0.0
    %448 = vmatpush2.msra.mxu0 0.0
    %449 = vmatprep.subr.mxu0 0.0
    %450 = vmatpush2.msra.mxu0 0.0
    %451 = vmatprep.subr.mxu0 0.0
    %452 = vmatpush2.msra.mxu0 0.0
    %453 = vmatprep.subr.mxu0 0.0
    %454 = vmatpush2.msra.mxu0 0.0
    %455 = vmatprep.subr.mxu0 0.0
    %456 = vmatpush2.msra.mxu0 0.0
    %457 = vmatprep.subr.mxu0 0.0
    %458 = vmatpush2.msra.mxu0 0.0
    %459 = vmatprep.subr.mxu0 0.0
    %460 = vmatpush2.msra.mxu0 0.0
    %461 = vmatprep.subr.mxu0 0.0
    %462 = vmatpush2.msra.mxu0 0.0
    %463 = vmatprep.subr.mxu0 0.0
    %464 = vmatpush2.msra.mxu0 0.0
    %465 = vmatprep.subr.mxu0 0.0
    %466 = vmatpush2.msra.mxu0 0.0
    %467 = vmatprep.subr.mxu0 0.0
    %468 = vmatpush2.msra.mxu0 0.0
    %469 = vmatprep.mubr.f32.mxu0 0.0
    %470 = vmatmul.mubr.f32.gmra.mxu0 %v120
    %v471 = vpop.f32.mrf.mxu0
    %v472 = vadd.f32 0.0, %v471
    %v473 = vpop.f32.mrf.mxu0
    %474 = vdwg.mxu0
    %475 = vmatprep.subr.mxu0 0.0
    %476 = vmatpush1.msra.mxu0 0.0
    %477 = vmatprep.subr.mxu0 0.0
    %478 = vmatpush1.msra.mxu0 0.0
    %479 = vmatprep.subr.mxu0 0.0
    %480 = vmatpush1.msra.mxu0 0.0
    %481 = vmatprep.subr.mxu0 0.0
    %482 = vmatpush1.msra.mxu0 0.0
    %483 = vmatprep.subr.mxu0 0.0
    %484 = vmatpush1.msra.mxu0 0.0
    %485 = vmatprep.subr.mxu0 0.0
    %486 = vmatpush1.msra.mxu0 0.0
    %487 = vmatprep.subr.mxu0 0.0
    %488 = vmatpush1.msra.mxu0 0.0
    %489 = vmatprep.subr.mxu0 0.0
    %490 = vmatpush1.msra.mxu0 0.0
    %491 = vmatprep.subr.mxu0 0.0
    %492 = vmatpush1.msra.mxu0 0.0
    %493 = vmatprep.subr.mxu0 0.0
    %494 = vmatpush1.msra.mxu0 0.0
    %495 = vmatprep.subr.mxu0 0.0
    %496 = vmatpush1.msra.mxu0 0.0
    %497 = vmatprep.subr.mxu0 0.0
    %498 = vmatpush1.msra.mxu0 0.0
    %499 = vmatprep.subr.mxu0 0.0
    %500 = vmatpush1.msra.mxu0 %v110
    %501 = vmatprep.subr.mxu0 0.0
    %502 = vmatpush1.msra.mxu0 %v109
    %503 = vmatprep.subr.mxu0 0.0
    %504 = vmatpush1.msra.mxu0 %v108
    %505 = vmatprep.subr.mxu0 0.0
    %506 = vmatpush1.msra.mxu0 %v107
    %507 = vmatprep.subr.mxu0 0.0
    %508 = vmatpush2.msra.mxu0 0.0
    %509 = vmatprep.subr.mxu0 0.0
    %510 = vmatpush2.msra.mxu0 0.0
    %511 = vmatprep.subr.mxu0 0.0
    %512 = vmatpush2.msra.mxu0 0.0
    %513 = vmatprep.subr.mxu0 0.0
    %514 = vmatpush2.msra.mxu0 0.0
    %515 = vmatprep.subr.mxu0 0.0
    %516 = vmatpush2.msra.mxu0 0.0
    %517 = vmatprep.subr.mxu0 0.0
    %518 = vmatpush2.msra.mxu0 0.0
    %519 = vmatprep.subr.mxu0 0.0
    %520 = vmatpush2.msra.mxu0 0.0
    %521 = vmatprep.subr.mxu0 0.0
    %522 = vmatpush2.msra.mxu0 0.0
    %523 = vmatprep.subr.mxu0 0.0
    %524 = vmatpush2.msra.mxu0 0.0
    %525 = vmatprep.subr.mxu0 0.0
    %526 = vmatpush2.msra.mxu0 0.0
    %527 = vmatprep.subr.mxu0 0.0
    %528 = vmatpush2.msra.mxu0 0.0
    %529 = vmatprep.subr.mxu0 0.0
    %530 = vmatpush2.msra.mxu0 0.0
    %531 = vmatprep.subr.mxu0 0.0
    %532 = vmatpush2.msra.mxu0 0.0
    %533 = vmatprep.subr.mxu0 0.0
    %534 = vmatpush2.msra.mxu0 0.0
    %535 = vmatprep.subr.mxu0 0.0
    %536 = vmatpush2.msra.mxu0 0.0
    %537 = vmatprep.subr.mxu0 0.0
    %538 = vmatpush2.msra.mxu0 0.0
    %539 = vmatprep.mubr.f32.mxu0 0.0
    %540 = vmatmul.mubr.f32.gmra.mxu0 %v193
    %v541 = vpop.f32.mrf.mxu0
    %v542 = vadd.f32 0.0, %v541
    %v543 = vpop.f32.mrf.mxu0
    %544 = vdwg.mxu0
    %545 = vmatprep.subr.mxu0 0.0
    %546 = vmatpush1.msra.mxu0 0.0
    %547 = vmatprep.subr.mxu0 0.0
    %548 = vmatpush1.msra.mxu0 0.0
    %549 = vmatprep.subr.mxu0 0.0
    %550 = vmatpush1.msra.mxu0 0.0
    %551 = vmatprep.subr.mxu0 0.0
    %552 = vmatpush1.msra.mxu0 0.0
    %553 = vmatprep.subr.mxu0 0.0
    %554 = vmatpush1.msra.mxu0 0.0
    %555 = vmatprep.subr.mxu0 0.0
    %556 = vmatpush1.msra.mxu0 0.0
    %557 = vmatprep.subr.mxu0 0.0
    %558 = vmatpush1.msra.mxu0 0.0
    %559 = vmatprep.subr.mxu0 0.0
    %560 = vmatpush1.msra.mxu0 0.0
    %561 = vmatprep.subr.mxu0 0.0
    %562 = vmatpush1.msra.mxu0 0.0
    %563 = vmatprep.subr.mxu0 0.0
    %564 = vmatpush1.msra.mxu0 0.0
    %565 = vmatprep.subr.mxu0 0.0
    %566 = vmatpush1.msra.mxu0 0.0
    %567 = vmatprep.subr.mxu0 0.0
    %568 = vmatpush1.msra.mxu0 0.0
    %569 = vmatprep.subr.mxu0 0.0
    %570 = vmatpush1.msra.mxu0 %v114
    %571 = vmatprep.subr.mxu0 0.0
    %572 = vmatpush1.msra.mxu0 %v113
    %573 = vmatprep.subr.mxu0 0.0
    %574 = vmatpush1.msra.mxu0 %v112
    %575 = vmatprep.subr.mxu0 0.0
    %576 = vmatpush1.msra.mxu0 %v111
    %577 = vmatprep.subr.mxu0 0.0
    %578 = vmatpush2.msra.mxu0 0.0
    %579 = vmatprep.subr.mxu0 0.0
    %580 = vmatpush2.msra.mxu0 0.0
    %581 = vmatprep.subr.mxu0 0.0
    %582 = vmatpush2.msra.mxu0 0.0
    %583 = vmatprep.subr.mxu0 0.0
    %584 = vmatpush2.msra.mxu0 0.0
    %585 = vmatprep.subr.mxu0 0.0
    %586 = vmatpush2.msra.mxu0 0.0
    %587 = vmatprep.subr.mxu0 0.0
    %588 = vmatpush2.msra.mxu0 0.0
    %589 = vmatprep.subr.mxu0 0.0
    %590 = vmatpush2.msra.mxu0 0.0
    %591 = vmatprep.subr.mxu0 0.0
    %592 = vmatpush2.msra.mxu0 0.0
    %593 = vmatprep.subr.mxu0 0.0
    %594 = vmatpush2.msra.mxu0 0.0
    %595 = vmatprep.subr.mxu0 0.0
    %596 = vmatpush2.msra.mxu0 0.0
    %597 = vmatprep.subr.mxu0 0.0
    %598 = vmatpush2.msra.mxu0 0.0
    %599 = vmatprep.subr.mxu0 0.0
    %600 = vmatpush2.msra.mxu0 0.0
    %601 = vmatprep.subr.mxu0 0.0
    %602 = vmatpush2.msra.mxu0 0.0
    %603 = vmatprep.subr.mxu0 0.0
    %604 = vmatpush2.msra.mxu0 0.0
    %605 = vmatprep.subr.mxu0 0.0
    %606 = vmatpush2.msra.mxu0 0.0
    %607 = vmatprep.subr.mxu0 0.0
    %608 = vmatpush2.msra.mxu0 0.0
    %609 = vmatprep.mubr.f32.mxu0 0.0
    %610 = vmatmul.mubr.f32.gmra.mxu0 %v120
    %v611 = vpop.f32.mrf.mxu0
    %v612 = vadd.f32 0.0, %v611
    %v613 = vpop.f32.mrf.mxu0
    %614 = vdwg.mxu0
    %615 = vmatprep.subr.mxu0 0.0
    %616 = vmatpush1.msra.mxu0 0.0
    %617 = vmatprep.subr.mxu0 0.0
    %618 = vmatpush1.msra.mxu0 0.0
    %619 = vmatprep.subr.mxu0 0.0
    %620 = vmatpush1.msra.mxu0 0.0
    %621 = vmatprep.subr.mxu0 0.0
    %622 = vmatpush1.msra.mxu0 0.0
    %623 = vmatprep.subr.mxu0 0.0
    %624 = vmatpush1.msra.mxu0 0.0
    %625 = vmatprep.subr.mxu0 0.0
    %626 = vmatpush1.msra.mxu0 0.0
    %627 = vmatprep.subr.mxu0 0.0
    %628 = vmatpush1.msra.mxu0 0.0
    %629 = vmatprep.subr.mxu0 0.0
    %630 = vmatpush1.msra.mxu0 0.0
    %631 = vmatprep.subr.mxu0 0.0
    %632 = vmatpush1.msra.mxu0 0.0
    %633 = vmatprep.subr.mxu0 0.0
    %634 = vmatpush1.msra.mxu0 0.0
    %635 = vmatprep.subr.mxu0 0.0
    %636 = vmatpush1.msra.mxu0 0.0
    %637 = vmatprep.subr.mxu0 0.0
    %638 = vmatpush1.msra.mxu0 0.0
    %639 = vmatprep.subr.mxu0 0.0
    %640 = vmatpush1.msra.mxu0 %v118
    %641 = vmatprep.subr.mxu0 0.0
    %642 = vmatpush1.msra.mxu0 %v117
    %643 = vmatprep.subr.mxu0 0.0
    %644 = vmatpush1.msra.mxu0 %v116
    %645 = vmatprep.subr.mxu0 0.0
    %646 = vmatpush1.msra.mxu0 %v115
    %647 = vmatprep.subr.mxu0 0.0
    %648 = vmatpush2.msra.mxu0 0.0
    %649 = vmatprep.subr.mxu0 0.0
    %650 = vmatpush2.msra.mxu0 0.0
    %651 = vmatprep.subr.mxu0 0.0
    %652 = vmatpush2.msra.mxu0 0.0
    %653 = vmatprep.subr.mxu0 0.0
    %654 = vmatpush2.msra.mxu0 0.0
    %655 = vmatprep.subr.mxu0 0.0
    %656 = vmatpush2.msra.mxu0 0.0
    %657 = vmatprep.subr.mxu0 0.0
    %658 = vmatpush2.msra.mxu0 0.0
    %659 = vmatprep.subr.mxu0 0.0
    %660 = vmatpush2.msra.mxu0 0.0
    %661 = vmatprep.subr.mxu0 0.0
    %662 = vmatpush2.msra.mxu0 0.0
    %663 = vmatprep.subr.mxu0 0.0
    %664 = vmatpush2.msra.mxu0 0.0
    %665 = vmatprep.subr.mxu0 0.0
    %666 = vmatpush2.msra.mxu0 0.0
    %667 = vmatprep.subr.mxu0 0.0
    %668 = vmatpush2.msra.mxu0 0.0
    %669 = vmatprep.subr.mxu0 0.0
    %670 = vmatpush2.msra.mxu0 0.0
    %671 = vmatprep.subr.mxu0 0.0
    %672 = vmatpush2.msra.mxu0 0.0
    %673 = vmatprep.subr.mxu0 0.0
    %674 = vmatpush2.msra.mxu0 0.0
    %675 = vmatprep.subr.mxu0 0.0
    %676 = vmatpush2.msra.mxu0 0.0
    %677 = vmatprep.subr.mxu0 0.0
    %678 = vmatpush2.msra.mxu0 0.0
    %679 = vmatprep.mubr.f32.mxu0 0.0
    %680 = vmatmul.mubr.f32.gmra.mxu0 %v193
    %v681 = vpop.f32.mrf.mxu0
    %v682 = vadd.f32 0.0, %v681
    %v683 = vpop.f32.mrf.mxu0
    %684 = vdwg.mxu0
    %v685 = vmul.f32 %v189, 0.35355338
    %v686 = vmul.f32 %v262, 0.35355338
    %v687 = vmul.f32 %v332, 0.35355338
    %v688 = vmul.f32 %v402, 0.35355338
    %v689 = vmul.f32 %v472, 0.35355338
    %v690 = vmul.f32 %v542, 0.35355338
    %v691 = vmul.f32 %v612, 0.35355338
    %v692 = vmul.f32 %v682, 0.35355338
    %694 = vrot.lane.b32.xlu0 %v189, 120
    %v695 = vpop.permute.xlu0 %694
    %vm696 = vcmask 64512
    %v698 = vsel %vm696, %v685, 0
    %v700 = vsel %vm696, %v695, 0
    %702 = vmatprep.subr.mxu0 0.0
    %703 = vmatpush1.xpose.msra.mxu0 0.0
    %704 = vmatprep.subr.mxu0 0.0
    %705 = vmatpush1.xpose.msra.mxu0 0.0
    %706 = vmatprep.subr.mxu0 0.0
    %707 = vmatpush1.xpose.msra.mxu0 0.0
    %708 = vmatprep.subr.mxu0 0.0
    %709 = vmatpush1.xpose.msra.mxu0 0.0
    %710 = vmatprep.subr.mxu0 0.0
    %711 = vmatpush1.xpose.msra.mxu0 0.0
    %712 = vmatprep.subr.mxu0 0.0
    %713 = vmatpush1.xpose.msra.mxu0 0.0
    %714 = vmatprep.subr.mxu0 0.0
    %715 = vmatpush1.xpose.msra.mxu0 0.0
    %716 = vmatprep.subr.mxu0 0.0
    %717 = vmatpush1.xpose.msra.mxu0 0.0
    %718 = vmatprep.subr.mxu0 0.0
    %719 = vmatpush1.xpose.msra.mxu0 0.0
    %720 = vmatprep.subr.mxu0 0.0
    %721 = vmatpush1.xpose.msra.mxu0 0.0
    %722 = vmatprep.subr.mxu0 0.0
    %723 = vmatpush1.xpose.msra.mxu0 0.0
    %724 = vmatprep.subr.mxu0 0.0
    %725 = vmatpush1.xpose.msra.mxu0 0.0
    %726 = vmatprep.subr.mxu0 0.0
    %727 = vmatpush1.xpose.msra.mxu0 0.0
    %728 = vmatprep.subr.mxu0 0.0
    %729 = vmatpush1.xpose.msra.mxu0 0.0
    %730 = vmatprep.subr.mxu0 0.0
    %731 = vmatpush1.xpose.msra.mxu0 0.0
    %732 = vmatprep.subr.mxu0 0.0
    %733 = vmatpush1.xpose.msra.mxu0 %v700
    %734 = vmatprep.subr.mxu0 0.0
    %735 = vmatpush2.xpose.msra.mxu0 0.0
    %736 = vmatprep.subr.mxu0 0.0
    %737 = vmatpush2.xpose.msra.mxu0 0.0
    %738 = vmatprep.subr.mxu0 0.0
    %739 = vmatpush2.xpose.msra.mxu0 0.0
    %740 = vmatprep.subr.mxu0 0.0
    %741 = vmatpush2.xpose.msra.mxu0 0.0
    %742 = vmatprep.subr.mxu0 0.0
    %743 = vmatpush2.xpose.msra.mxu0 0.0
    %744 = vmatprep.subr.mxu0 0.0
    %745 = vmatpush2.xpose.msra.mxu0 0.0
    %746 = vmatprep.subr.mxu0 0.0
    %747 = vmatpush2.xpose.msra.mxu0 0.0
    %748 = vmatprep.subr.mxu0 0.0
    %749 = vmatpush2.xpose.msra.mxu0 0.0
    %750 = vmatprep.subr.mxu0 0.0
    %751 = vmatpush2.xpose.msra.mxu0 0.0
    %752 = vmatprep.subr.mxu0 0.0
    %753 = vmatpush2.xpose.msra.mxu0 0.0
    %754 = vmatprep.subr.mxu0 0.0
    %755 = vmatpush2.xpose.msra.mxu0 0.0
    %756 = vmatprep.subr.mxu0 0.0
    %757 = vmatpush2.xpose.msra.mxu0 0.0
    %758 = vmatprep.subr.mxu0 0.0
    %759 = vmatpush2.xpose.msra.mxu0 0.0
    %760 = vmatprep.subr.mxu0 0.0
    %761 = vmatpush2.xpose.msra.mxu0 0.0
    %762 = vmatprep.subr.mxu0 0.0
    %763 = vmatpush2.xpose.msra.mxu0 0.0
    %764 = vmatprep.subr.mxu0 0.0
    %765 = vmatpush2.xpose.msra.mxu0 0.0
    %766 = vmatprep.mubr.f32.mxu0 0.0
    %767 = vmatmul.mubr.f32.gmra.mxu0 %v698
    %v768 = vpop.f32.mrf.mxu0
    %v769 = vadd.f32 0.0, %v768
    %v770 = vpop.f32.mrf.mxu0
    %771 = vdwg.mxu0
    %773 = vrot.lane.b32.xlu0 %v262, 120
    %v774 = vpop.permute.xlu0 %773
    %v776 = vsel %vm696, %v686, 0
    %v778 = vsel %vm696, %v774, 0
    %780 = vmatprep.subr.mxu0 0.0
    %781 = vmatpush1.xpose.msra.mxu0 0.0
    %782 = vmatprep.subr.mxu0 0.0
    %783 = vmatpush1.xpose.msra.mxu0 0.0
    %784 = vmatprep.subr.mxu0 0.0
    %785 = vmatpush1.xpose.msra.mxu0 0.0
    %786 = vmatprep.subr.mxu0 0.0
    %787 = vmatpush1.xpose.msra.mxu0 0.0
    %788 = vmatprep.subr.mxu0 0.0
    %789 = vmatpush1.xpose.msra.mxu0 0.0
    %790 = vmatprep.subr.mxu0 0.0
    %791 = vmatpush1.xpose.msra.mxu0 0.0
    %792 = vmatprep.subr.mxu0 0.0
    %793 = vmatpush1.xpose.msra.mxu0 0.0
    %794 = vmatprep.subr.mxu0 0.0
    %795 = vmatpush1.xpose.msra.mxu0 0.0
    %796 = vmatprep.subr.mxu0 0.0
    %797 = vmatpush1.xpose.msra.mxu0 0.0
    %798 = vmatprep.subr.mxu0 0.0
    %799 = vmatpush1.xpose.msra.mxu0 0.0
    %800 = vmatprep.subr.mxu0 0.0
    %801 = vmatpush1.xpose.msra.mxu0 0.0
    %802 = vmatprep.subr.mxu0 0.0
    %803 = vmatpush1.xpose.msra.mxu0 0.0
    %804 = vmatprep.subr.mxu0 0.0
    %805 = vmatpush1.xpose.msra.mxu0 0.0
    %806 = vmatprep.subr.mxu0 0.0
    %807 = vmatpush1.xpose.msra.mxu0 0.0
    %808 = vmatprep.subr.mxu0 0.0
    %809 = vmatpush1.xpose.msra.mxu0 0.0
    %810 = vmatprep.subr.mxu0 0.0
    %811 = vmatpush1.xpose.msra.mxu0 %v778
    %812 = vmatprep.subr.mxu0 0.0
    %813 = vmatpush2.xpose.msra.mxu0 0.0
    %814 = vmatprep.subr.mxu0 0.0
    %815 = vmatpush2.xpose.msra.mxu0 0.0
    %816 = vmatprep.subr.mxu0 0.0
    %817 = vmatpush2.xpose.msra.mxu0 0.0
    %818 = vmatprep.subr.mxu0 0.0
    %819 = vmatpush2.xpose.msra.mxu0 0.0
    %820 = vmatprep.subr.mxu0 0.0
    %821 = vmatpush2.xpose.msra.mxu0 0.0
    %822 = vmatprep.subr.mxu0 0.0
    %823 = vmatpush2.xpose.msra.mxu0 0.0
    %824 = vmatprep.subr.mxu0 0.0
    %825 = vmatpush2.xpose.msra.mxu0 0.0
    %826 = vmatprep.subr.mxu0 0.0
    %827 = vmatpush2.xpose.msra.mxu0 0.0
    %828 = vmatprep.subr.mxu0 0.0
    %829 = vmatpush2.xpose.msra.mxu0 0.0
    %830 = vmatprep.subr.mxu0 0.0
    %831 = vmatpush2.xpose.msra.mxu0 0.0
    %832 = vmatprep.subr.mxu0 0.0
    %833 = vmatpush2.xpose.msra.mxu0 0.0
    %834 = vmatprep.subr.mxu0 0.0
    %835 = vmatpush2.xpose.msra.mxu0 0.0
    %836 = vmatprep.subr.mxu0 0.0
    %837 = vmatpush2.xpose.msra.mxu0 0.0
    %838 = vmatprep.subr.mxu0 0.0
    %839 = vmatpush2.xpose.msra.mxu0 0.0
    %840 = vmatprep.subr.mxu0 0.0
    %841 = vmatpush2.xpose.msra.mxu0 0.0
    %842 = vmatprep.subr.mxu0 0.0
    %843 = vmatpush2.xpose.msra.mxu0 0.0
    %844 = vmatprep.mubr.f32.mxu0 0.0
    %845 = vmatmul.mubr.f32.gmra.mxu0 %v776
    %v846 = vpop.f32.mrf.mxu0
    %v847 = vadd.f32 0.0, %v846
    %v848 = vpop.f32.mrf.mxu0
    %849 = vdwg.mxu0
    %851 = vrot.lane.b32.xlu0 %v332, 120
    %v852 = vpop.permute.xlu0 %851
    %v854 = vsel %vm696, %v687, 0
    %v856 = vsel %vm696, %v852, 0
    %858 = vmatprep.subr.mxu0 0.0
    %859 = vmatpush1.xpose.msra.mxu0 0.0
    %860 = vmatprep.subr.mxu0 0.0
    %861 = vmatpush1.xpose.msra.mxu0 0.0
    %862 = vmatprep.subr.mxu0 0.0
    %863 = vmatpush1.xpose.msra.mxu0 0.0
    %864 = vmatprep.subr.mxu0 0.0
    %865 = vmatpush1.xpose.msra.mxu0 0.0
    %866 = vmatprep.subr.mxu0 0.0
    %867 = vmatpush1.xpose.msra.mxu0 0.0
    %868 = vmatprep.subr.mxu0 0.0
    %869 = vmatpush1.xpose.msra.mxu0 0.0
    %870 = vmatprep.subr.mxu0 0.0
    %871 = vmatpush1.xpose.msra.mxu0 0.0
    %872 = vmatprep.subr.mxu0 0.0
    %873 = vmatpush1.xpose.msra.mxu0 0.0
    %874 = vmatprep.subr.mxu0 0.0
    %875 = vmatpush1.xpose.msra.mxu0 0.0
    %876 = vmatprep.subr.mxu0 0.0
    %877 = vmatpush1.xpose.msra.mxu0 0.0
    %878 = vmatprep.subr.mxu0 0.0
    %879 = vmatpush1.xpose.msra.mxu0 0.0
    %880 = vmatprep.subr.mxu0 0.0
    %881 = vmatpush1.xpose.msra.mxu0 0.0
    %882 = vmatprep.subr.mxu0 0.0
    %883 = vmatpush1.xpose.msra.mxu0 0.0
    %884 = vmatprep.subr.mxu0 0.0
    %885 = vmatpush1.xpose.msra.mxu0 0.0
    %886 = vmatprep.subr.mxu0 0.0
    %887 = vmatpush1.xpose.msra.mxu0 0.0
    %888 = vmatprep.subr.mxu0 0.0
    %889 = vmatpush1.xpose.msra.mxu0 %v856
    %890 = vmatprep.subr.mxu0 0.0
    %891 = vmatpush2.xpose.msra.mxu0 0.0
    %892 = vmatprep.subr.mxu0 0.0
    %893 = vmatpush2.xpose.msra.mxu0 0.0
    %894 = vmatprep.subr.mxu0 0.0
    %895 = vmatpush2.xpose.msra.mxu0 0.0
    %896 = vmatprep.subr.mxu0 0.0
    %897 = vmatpush2.xpose.msra.mxu0 0.0
    %898 = vmatprep.subr.mxu0 0.0
    %899 = vmatpush2.xpose.msra.mxu0 0.0
    %900 = vmatprep.subr.mxu0 0.0
    %901 = vmatpush2.xpose.msra.mxu0 0.0
    %902 = vmatprep.subr.mxu0 0.0
    %903 = vmatpush2.xpose.msra.mxu0 0.0
    %904 = vmatprep.subr.mxu0 0.0
    %905 = vmatpush2.xpose.msra.mxu0 0.0
    %906 = vmatprep.subr.mxu0 0.0
    %907 = vmatpush2.xpose.msra.mxu0 0.0
    %908 = vmatprep.subr.mxu0 0.0
    %909 = vmatpush2.xpose.msra.mxu0 0.0
    %910 = vmatprep.subr.mxu0 0.0
    %911 = vmatpush2.xpose.msra.mxu0 0.0
    %912 = vmatprep.subr.mxu0 0.0
    %913 = vmatpush2.xpose.msra.mxu0 0.0
    %914 = vmatprep.subr.mxu0 0.0
    %915 = vmatpush2.xpose.msra.mxu0 0.0
    %916 = vmatprep.subr.mxu0 0.0
    %917 = vmatpush2.xpose.msra.mxu0 0.0
    %918 = vmatprep.subr.mxu0 0.0
    %919 = vmatpush2.xpose.msra.mxu0 0.0
    %920 = vmatprep.subr.mxu0 0.0
    %921 = vmatpush2.xpose.msra.mxu0 0.0
    %922 = vmatprep.mubr.f32.mxu0 0.0
    %923 = vmatmul.mubr.f32.gmra.mxu0 %v854
    %v924 = vpop.f32.mrf.mxu0
    %v925 = vadd.f32 0.0, %v924
    %v926 = vpop.f32.mrf.mxu0
    %927 = vdwg.mxu0
    %929 = vrot.lane.b32.xlu0 %v402, 120
    %v930 = vpop.permute.xlu0 %929
    %v932 = vsel %vm696, %v688, 0
    %v934 = vsel %vm696, %v930, 0
    %936 = vmatprep.subr.mxu0 0.0
    %937 = vmatpush1.xpose.msra.mxu0 0.0
    %938 = vmatprep.subr.mxu0 0.0
    %939 = vmatpush1.xpose.msra.mxu0 0.0
    %940 = vmatprep.subr.mxu0 0.0
    %941 = vmatpush1.xpose.msra.mxu0 0.0
    %942 = vmatprep.subr.mxu0 0.0
    %943 = vmatpush1.xpose.msra.mxu0 0.0
    %944 = vmatprep.subr.mxu0 0.0
    %945 = vmatpush1.xpose.msra.mxu0 0.0
    %946 = vmatprep.subr.mxu0 0.0
    %947 = vmatpush1.xpose.msra.mxu0 0.0
    %948 = vmatprep.subr.mxu0 0.0
    %949 = vmatpush1.xpose.msra.mxu0 0.0
    %950 = vmatprep.subr.mxu0 0.0
    %951 = vmatpush1.xpose.msra.mxu0 0.0
    %952 = vmatprep.subr.mxu0 0.0
    %953 = vmatpush1.xpose.msra.mxu0 0.0
    %954 = vmatprep.subr.mxu0 0.0
    %955 = vmatpush1.xpose.msra.mxu0 0.0
    %956 = vmatprep.subr.mxu0 0.0
    %957 = vmatpush1.xpose.msra.mxu0 0.0
    %958 = vmatprep.subr.mxu0 0.0
    %959 = vmatpush1.xpose.msra.mxu0 0.0
    %960 = vmatprep.subr.mxu0 0.0
    %961 = vmatpush1.xpose.msra.mxu0 0.0
    %962 = vmatprep.subr.mxu0 0.0
    %963 = vmatpush1.xpose.msra.mxu0 0.0
    %964 = vmatprep.subr.mxu0 0.0
    %965 = vmatpush1.xpose.msra.mxu0 0.0
    %966 = vmatprep.subr.mxu0 0.0
    %967 = vmatpush1.xpose.msra.mxu0 %v934
    %968 = vmatprep.subr.mxu0 0.0
    %969 = vmatpush2.xpose.msra.mxu0 0.0
    %970 = vmatprep.subr.mxu0 0.0
    %971 = vmatpush2.xpose.msra.mxu0 0.0
    %972 = vmatprep.subr.mxu0 0.0
    %973 = vmatpush2.xpose.msra.mxu0 0.0
    %974 = vmatprep.subr.mxu0 0.0
    %975 = vmatpush2.xpose.msra.mxu0 0.0
    %976 = vmatprep.subr.mxu0 0.0
    %977 = vmatpush2.xpose.msra.mxu0 0.0
    %978 = vmatprep.subr.mxu0 0.0
    %979 = vmatpush2.xpose.msra.mxu0 0.0
    %980 = vmatprep.subr.mxu0 0.0
    %981 = vmatpush2.xpose.msra.mxu0 0.0
    %982 = vmatprep.subr.mxu0 0.0
    %983 = vmatpush2.xpose.msra.mxu0 0.0
    %984 = vmatprep.subr.mxu0 0.0
    %985 = vmatpush2.xpose.msra.mxu0 0.0
    %986 = vmatprep.subr.mxu0 0.0
    %987 = vmatpush2.xpose.msra.mxu0 0.0
    %988 = vmatprep.subr.mxu0 0.0
    %989 = vmatpush2.xpose.msra.mxu0 0.0
    %990 = vmatprep.subr.mxu0 0.0
    %991 = vmatpush2.xpose.msra.mxu0 0.0
    %992 = vmatprep.subr.mxu0 0.0
    %993 = vmatpush2.xpose.msra.mxu0 0.0
    %994 = vmatprep.subr.mxu0 0.0
    %995 = vmatpush2.xpose.msra.mxu0 0.0
    %996 = vmatprep.subr.mxu0 0.0
    %997 = vmatpush2.xpose.msra.mxu0 0.0
    %998 = vmatprep.subr.mxu0 0.0
    %999 = vmatpush2.xpose.msra.mxu0 0.0
    %1000 = vmatprep.mubr.f32.mxu0 0.0
    %1001 = vmatmul.mubr.f32.gmra.mxu0 %v932
    %v1002 = vpop.f32.mrf.mxu0
    %v1003 = vadd.f32 0.0, %v1002
    %v1004 = vpop.f32.mrf.mxu0
    %1005 = vdwg.mxu0
    %1007 = vrot.lane.b32.xlu0 %v472, 120
    %v1008 = vpop.permute.xlu0 %1007
    %v1010 = vsel %vm696, %v689, 0
    %v1012 = vsel %vm696, %v1008, 0
    %1014 = vmatprep.subr.mxu0 0.0
    %1015 = vmatpush1.xpose.msra.mxu0 0.0
    %1016 = vmatprep.subr.mxu0 0.0
    %1017 = vmatpush1.xpose.msra.mxu0 0.0
    %1018 = vmatprep.subr.mxu0 0.0
    %1019 = vmatpush1.xpose.msra.mxu0 0.0
    %1020 = vmatprep.subr.mxu0 0.0
    %1021 = vmatpush1.xpose.msra.mxu0 0.0
    %1022 = vmatprep.subr.mxu0 0.0
    %1023 = vmatpush1.xpose.msra.mxu0 0.0
    %1024 = vmatprep.subr.mxu0 0.0
    %1025 = vmatpush1.xpose.msra.mxu0 0.0
    %1026 = vmatprep.subr.mxu0 0.0
    %1027 = vmatpush1.xpose.msra.mxu0 0.0
    %1028 = vmatprep.subr.mxu0 0.0
    %1029 = vmatpush1.xpose.msra.mxu0 0.0
    %1030 = vmatprep.subr.mxu0 0.0
    %1031 = vmatpush1.xpose.msra.mxu0 0.0
    %1032 = vmatprep.subr.mxu0 0.0
    %1033 = vmatpush1.xpose.msra.mxu0 0.0
    %1034 = vmatprep.subr.mxu0 0.0
    %1035 = vmatpush1.xpose.msra.mxu0 0.0
    %1036 = vmatprep.subr.mxu0 0.0
    %1037 = vmatpush1.xpose.msra.mxu0 0.0
    %1038 = vmatprep.subr.mxu0 0.0
    %1039 = vmatpush1.xpose.msra.mxu0 0.0
    %1040 = vmatprep.subr.mxu0 0.0
    %1041 = vmatpush1.xpose.msra.mxu0 0.0
    %1042 = vmatprep.subr.mxu0 0.0
    %1043 = vmatpush1.xpose.msra.mxu0 0.0
    %1044 = vmatprep.subr.mxu0 0.0
    %1045 = vmatpush1.xpose.msra.mxu0 %v1012
    %1046 = vmatprep.subr.mxu0 0.0
    %1047 = vmatpush2.xpose.msra.mxu0 0.0
    %1048 = vmatprep.subr.mxu0 0.0
    %1049 = vmatpush2.xpose.msra.mxu0 0.0
    %1050 = vmatprep.subr.mxu0 0.0
    %1051 = vmatpush2.xpose.msra.mxu0 0.0
    %1052 = vmatprep.subr.mxu0 0.0
    %1053 = vmatpush2.xpose.msra.mxu0 0.0
    %1054 = vmatprep.subr.mxu0 0.0
    %1055 = vmatpush2.xpose.msra.mxu0 0.0
    %1056 = vmatprep.subr.mxu0 0.0
    %1057 = vmatpush2.xpose.msra.mxu0 0.0
    %1058 = vmatprep.subr.mxu0 0.0
    %1059 = vmatpush2.xpose.msra.mxu0 0.0
    %1060 = vmatprep.subr.mxu0 0.0
    %1061 = vmatpush2.xpose.msra.mxu0 0.0
    %1062 = vmatprep.subr.mxu0 0.0
    %1063 = vmatpush2.xpose.msra.mxu0 0.0
    %1064 = vmatprep.subr.mxu0 0.0
    %1065 = vmatpush2.xpose.msra.mxu0 0.0
    %1066 = vmatprep.subr.mxu0 0.0
    %1067 = vmatpush2.xpose.msra.mxu0 0.0
    %1068 = vmatprep.subr.mxu0 0.0
    %1069 = vmatpush2.xpose.msra.mxu0 0.0
    %1070 = vmatprep.subr.mxu0 0.0
    %1071 = vmatpush2.xpose.msra.mxu0 0.0
    %1072 = vmatprep.subr.mxu0 0.0
    %1073 = vmatpush2.xpose.msra.mxu0 0.0
    %1074 = vmatprep.subr.mxu0 0.0
    %1075 = vmatpush2.xpose.msra.mxu0 0.0
    %1076 = vmatprep.subr.mxu0 0.0
    %1077 = vmatpush2.xpose.msra.mxu0 0.0
    %1078 = vmatprep.mubr.f32.mxu0 0.0
    %1079 = vmatmul.mubr.f32.gmra.mxu0 %v1010
    %v1080 = vpop.f32.mrf.mxu0
    %v1081 = vadd.f32 0.0, %v1080
    %v1082 = vpop.f32.mrf.mxu0
    %1083 = vdwg.mxu0
    %1085 = vrot.lane.b32.xlu0 %v542, 120
    %v1086 = vpop.permute.xlu0 %1085
    %v1088 = vsel %vm696, %v690, 0
    %v1090 = vsel %vm696, %v1086, 0
    %1092 = vmatprep.subr.mxu0 0.0
    %1093 = vmatpush1.xpose.msra.mxu0 0.0
    %1094 = vmatprep.subr.mxu0 0.0
    %1095 = vmatpush1.xpose.msra.mxu0 0.0
    %1096 = vmatprep.subr.mxu0 0.0
    %1097 = vmatpush1.xpose.msra.mxu0 0.0
    %1098 = vmatprep.subr.mxu0 0.0
    %1099 = vmatpush1.xpose.msra.mxu0 0.0
    %1100 = vmatprep.subr.mxu0 0.0
    %1101 = vmatpush1.xpose.msra.mxu0 0.0
    %1102 = vmatprep.subr.mxu0 0.0
    %1103 = vmatpush1.xpose.msra.mxu0 0.0
    %1104 = vmatprep.subr.mxu0 0.0
    %1105 = vmatpush1.xpose.msra.mxu0 0.0
    %1106 = vmatprep.subr.mxu0 0.0
    %1107 = vmatpush1.xpose.msra.mxu0 0.0
    %1108 = vmatprep.subr.mxu0 0.0
    %1109 = vmatpush1.xpose.msra.mxu0 0.0
    %1110 = vmatprep.subr.mxu0 0.0
    %1111 = vmatpush1.xpose.msra.mxu0 0.0
    %1112 = vmatprep.subr.mxu0 0.0
    %1113 = vmatpush1.xpose.msra.mxu0 0.0
    %1114 = vmatprep.subr.mxu0 0.0
    %1115 = vmatpush1.xpose.msra.mxu0 0.0
    %1116 = vmatprep.subr.mxu0 0.0
    %1117 = vmatpush1.xpose.msra.mxu0 0.0
    %1118 = vmatprep.subr.mxu0 0.0
    %1119 = vmatpush1.xpose.msra.mxu0 0.0
    %1120 = vmatprep.subr.mxu0 0.0
    %1121 = vmatpush1.xpose.msra.mxu0 0.0
    %1122 = vmatprep.subr.mxu0 0.0
    %1123 = vmatpush1.xpose.msra.mxu0 %v1090
    %1124 = vmatprep.subr.mxu0 0.0
    %1125 = vmatpush2.xpose.msra.mxu0 0.0
    %1126 = vmatprep.subr.mxu0 0.0
    %1127 = vmatpush2.xpose.msra.mxu0 0.0
    %1128 = vmatprep.subr.mxu0 0.0
    %1129 = vmatpush2.xpose.msra.mxu0 0.0
    %1130 = vmatprep.subr.mxu0 0.0
    %1131 = vmatpush2.xpose.msra.mxu0 0.0
    %1132 = vmatprep.subr.mxu0 0.0
    %1133 = vmatpush2.xpose.msra.mxu0 0.0
    %1134 = vmatprep.subr.mxu0 0.0
    %1135 = vmatpush2.xpose.msra.mxu0 0.0
    %1136 = vmatprep.subr.mxu0 0.0
    %1137 = vmatpush2.xpose.msra.mxu0 0.0
    %1138 = vmatprep.subr.mxu0 0.0
    %1139 = vmatpush2.xpose.msra.mxu0 0.0
    %1140 = vmatprep.subr.mxu0 0.0
    %1141 = vmatpush2.xpose.msra.mxu0 0.0
    %1142 = vmatprep.subr.mxu0 0.0
    %1143 = vmatpush2.xpose.msra.mxu0 0.0
    %1144 = vmatprep.subr.mxu0 0.0
    %1145 = vmatpush2.xpose.msra.mxu0 0.0
    %1146 = vmatprep.subr.mxu0 0.0
    %1147 = vmatpush2.xpose.msra.mxu0 0.0
    %1148 = vmatprep.subr.mxu0 0.0
    %1149 = vmatpush2.xpose.msra.mxu0 0.0
    %1150 = vmatprep.subr.mxu0 0.0
    %1151 = vmatpush2.xpose.msra.mxu0 0.0
    %1152 = vmatprep.subr.mxu0 0.0
    %1153 = vmatpush2.xpose.msra.mxu0 0.0
    %1154 = vmatprep.subr.mxu0 0.0
    %1155 = vmatpush2.xpose.msra.mxu0 0.0
    %1156 = vmatprep.mubr.f32.mxu0 0.0
    %1157 = vmatmul.mubr.f32.gmra.mxu0 %v1088
    %v1158 = vpop.f32.mrf.mxu0
    %v1159 = vadd.f32 0.0, %v1158
    %v1160 = vpop.f32.mrf.mxu0
    %1161 = vdwg.mxu0
    %1163 = vrot.lane.b32.xlu0 %v612, 120
    %v1164 = vpop.permute.xlu0 %1163
    %v1166 = vsel %vm696, %v691, 0
    %v1168 = vsel %vm696, %v1164, 0
    %1170 = vmatprep.subr.mxu0 0.0
    %1171 = vmatpush1.xpose.msra.mxu0 0.0
    %1172 = vmatprep.subr.mxu0 0.0
    %1173 = vmatpush1.xpose.msra.mxu0 0.0
    %1174 = vmatprep.subr.mxu0 0.0
    %1175 = vmatpush1.xpose.msra.mxu0 0.0
    %1176 = vmatprep.subr.mxu0 0.0
    %1177 = vmatpush1.xpose.msra.mxu0 0.0
    %1178 = vmatprep.subr.mxu0 0.0
    %1179 = vmatpush1.xpose.msra.mxu0 0.0
    %1180 = vmatprep.subr.mxu0 0.0
    %1181 = vmatpush1.xpose.msra.mxu0 0.0
    %1182 = vmatprep.subr.mxu0 0.0
    %1183 = vmatpush1.xpose.msra.mxu0 0.0
    %1184 = vmatprep.subr.mxu0 0.0
    %1185 = vmatpush1.xpose.msra.mxu0 0.0
    %1186 = vmatprep.subr.mxu0 0.0
    %1187 = vmatpush1.xpose.msra.mxu0 0.0
    %1188 = vmatprep.subr.mxu0 0.0
    %1189 = vmatpush1.xpose.msra.mxu0 0.0
    %1190 = vmatprep.subr.mxu0 0.0
    %1191 = vmatpush1.xpose.msra.mxu0 0.0
    %1192 = vmatprep.subr.mxu0 0.0
    %1193 = vmatpush1.xpose.msra.mxu0 0.0
    %1194 = vmatprep.subr.mxu0 0.0
    %1195 = vmatpush1.xpose.msra.mxu0 0.0
    %1196 = vmatprep.subr.mxu0 0.0
    %1197 = vmatpush1.xpose.msra.mxu0 0.0
    %1198 = vmatprep.subr.mxu0 0.0
    %1199 = vmatpush1.xpose.msra.mxu0 0.0
    %1200 = vmatprep.subr.mxu0 0.0
    %1201 = vmatpush1.xpose.msra.mxu0 %v1168
    %1202 = vmatprep.subr.mxu0 0.0
    %1203 = vmatpush2.xpose.msra.mxu0 0.0
    %1204 = vmatprep.subr.mxu0 0.0
    %1205 = vmatpush2.xpose.msra.mxu0 0.0
    %1206 = vmatprep.subr.mxu0 0.0
    %1207 = vmatpush2.xpose.msra.mxu0 0.0
    %1208 = vmatprep.subr.mxu0 0.0
    %1209 = vmatpush2.xpose.msra.mxu0 0.0
    %1210 = vmatprep.subr.mxu0 0.0
    %1211 = vmatpush2.xpose.msra.mxu0 0.0
    %1212 = vmatprep.subr.mxu0 0.0
    %1213 = vmatpush2.xpose.msra.mxu0 0.0
    %1214 = vmatprep.subr.mxu0 0.0
    %1215 = vmatpush2.xpose.msra.mxu0 0.0
    %1216 = vmatprep.subr.mxu0 0.0
    %1217 = vmatpush2.xpose.msra.mxu0 0.0
    %1218 = vmatprep.subr.mxu0 0.0
    %1219 = vmatpush2.xpose.msra.mxu0 0.0
    %1220 = vmatprep.subr.mxu0 0.0
    %1221 = vmatpush2.xpose.msra.mxu0 0.0
    %1222 = vmatprep.subr.mxu0 0.0
    %1223 = vmatpush2.xpose.msra.mxu0 0.0
    %1224 = vmatprep.subr.mxu0 0.0
    %1225 = vmatpush2.xpose.msra.mxu0 0.0
    %1226 = vmatprep.subr.mxu0 0.0
    %1227 = vmatpush2.xpose.msra.mxu0 0.0
    %1228 = vmatprep.subr.mxu0 0.0
    %1229 = vmatpush2.xpose.msra.mxu0 0.0
    %1230 = vmatprep.subr.mxu0 0.0
    %1231 = vmatpush2.xpose.msra.mxu0 0.0
    %1232 = vmatprep.subr.mxu0 0.0
    %1233 = vmatpush2.xpose.msra.mxu0 0.0
    %1234 = vmatprep.mubr.f32.mxu0 0.0
    %1235 = vmatmul.mubr.f32.gmra.mxu0 %v1166
    %v1236 = vpop.f32.mrf.mxu0
    %v1237 = vadd.f32 0.0, %v1236
    %v1238 = vpop.f32.mrf.mxu0
    %1239 = vdwg.mxu0
    %1241 = vrot.lane.b32.xlu0 %v682, 120
    %v1242 = vpop.permute.xlu0 %1241
    %v1244 = vsel %vm696, %v692, 0
    %v1246 = vsel %vm696, %v1242, 0
    %1248 = vmatprep.subr.mxu0 0.0
    %1249 = vmatpush1.xpose.msra.mxu0 0.0
    %1250 = vmatprep.subr.mxu0 0.0
    %1251 = vmatpush1.xpose.msra.mxu0 0.0
    %1252 = vmatprep.subr.mxu0 0.0
    %1253 = vmatpush1.xpose.msra.mxu0 0.0
    %1254 = vmatprep.subr.mxu0 0.0
    %1255 = vmatpush1.xpose.msra.mxu0 0.0
    %1256 = vmatprep.subr.mxu0 0.0
    %1257 = vmatpush1.xpose.msra.mxu0 0.0
    %1258 = vmatprep.subr.mxu0 0.0
    %1259 = vmatpush1.xpose.msra.mxu0 0.0
    %1260 = vmatprep.subr.mxu0 0.0
    %1261 = vmatpush1.xpose.msra.mxu0 0.0
    %1262 = vmatprep.subr.mxu0 0.0
    %1263 = vmatpush1.xpose.msra.mxu0 0.0
    %1264 = vmatprep.subr.mxu0 0.0
    %1265 = vmatpush1.xpose.msra.mxu0 0.0
    %1266 = vmatprep.subr.mxu0 0.0
    %1267 = vmatpush1.xpose.msra.mxu0 0.0
    %1268 = vmatprep.subr.mxu0 0.0
    %1269 = vmatpush1.xpose.msra.mxu0 0.0
    %1270 = vmatprep.subr.mxu0 0.0
    %1271 = vmatpush1.xpose.msra.mxu0 0.0
    %1272 = vmatprep.subr.mxu0 0.0
    %1273 = vmatpush1.xpose.msra.mxu0 0.0
    %1274 = vmatprep.subr.mxu0 0.0
    %1275 = vmatpush1.xpose.msra.mxu0 0.0
    %1276 = vmatprep.subr.mxu0 0.0
    %1277 = vmatpush1.xpose.msra.mxu0 0.0
    %1278 = vmatprep.subr.mxu0 0.0
    %1279 = vmatpush1.xpose.msra.mxu0 %v1246
    %1280 = vmatprep.subr.mxu0 0.0
    %1281 = vmatpush2.xpose.msra.mxu0 0.0
    %1282 = vmatprep.subr.mxu0 0.0
    %1283 = vmatpush2.xpose.msra.mxu0 0.0
    %1284 = vmatprep.subr.mxu0 0.0
    %1285 = vmatpush2.xpose.msra.mxu0 0.0
    %1286 = vmatprep.subr.mxu0 0.0
    %1287 = vmatpush2.xpose.msra.mxu0 0.0
    %1288 = vmatprep.subr.mxu0 0.0
    %1289 = vmatpush2.xpose.msra.mxu0 0.0
    %1290 = vmatprep.subr.mxu0 0.0
    %1291 = vmatpush2.xpose.msra.mxu0 0.0
    %1292 = vmatprep.subr.mxu0 0.0
    %1293 = vmatpush2.xpose.msra.mxu0 0.0
    %1294 = vmatprep.subr.mxu0 0.0
    %1295 = vmatpush2.xpose.msra.mxu0 0.0
    %1296 = vmatprep.subr.mxu0 0.0
    %1297 = vmatpush2.xpose.msra.mxu0 0.0
    %1298 = vmatprep.subr.mxu0 0.0
    %1299 = vmatpush2.xpose.msra.mxu0 0.0
    %1300 = vmatprep.subr.mxu0 0.0
    %1301 = vmatpush2.xpose.msra.mxu0 0.0
    %1302 = vmatprep.subr.mxu0 0.0
    %1303 = vmatpush2.xpose.msra.mxu0 0.0
    %1304 = vmatprep.subr.mxu0 0.0
    %1305 = vmatpush2.xpose.msra.mxu0 0.0
    %1306 = vmatprep.subr.mxu0 0.0
    %1307 = vmatpush2.xpose.msra.mxu0 0.0
    %1308 = vmatprep.subr.mxu0 0.0
    %1309 = vmatpush2.xpose.msra.mxu0 0.0
    %1310 = vmatprep.subr.mxu0 0.0
    %1311 = vmatpush2.xpose.msra.mxu0 0.0
    %1312 = vmatprep.mubr.f32.mxu0 0.0
    %1313 = vmatmul.mubr.f32.gmra.mxu0 %v1244
    %v1314 = vpop.f32.mrf.mxu0
    %v1315 = vadd.f32 0.0, %v1314
    %v1316 = vpop.f32.mrf.mxu0
    %1317 = vdwg.mxu0
    %v1318 = vld [vmem:[%s1] sm:$0xff]
    %v1319 = vld [vmem:[%s1 + $0x8] sm:$0xff]
    %v1320 = vld [vmem:[%s1 + $0x10] sm:$0xff]
    %v1321 = vld [vmem:[%s1 + $0x18] sm:$0xff]
    %v1322 = vld [vmem:[%s1 + $0x20] sm:$0xff]
    %v1323 = vld [vmem:[%s1 + $0x28] sm:$0xff]
    %v1324 = vld [vmem:[%s1 + $0x30] sm:$0xff]
    %v1325 = vld [vmem:[%s1 + $0x38] sm:$0xff]
    %vm1326 = vcmp.gt.f32.partialorder %v1318, 0.0
    %vm1327 = vcmp.gt.f32.partialorder %v1319, 0.0
    %vm1328 = vcmp.gt.f32.partialorder %v1320, 0.0
    %vm1329 = vcmp.gt.f32.partialorder %v1321, 0.0
    %vm1330 = vcmp.gt.f32.partialorder %v1322, 0.0
    %vm1331 = vcmp.gt.f32.partialorder %v1323, 0.0
    %vm1332 = vcmp.gt.f32.partialorder %v1324, 0.0
    %vm1333 = vcmp.gt.f32.partialorder %v1325, 0.0
    %v1334 = vsel %vm1326, -1e+30, %v769
    %v1335 = vsel %vm1327, -1e+30, %v847
    %v1336 = vsel %vm1328, -1e+30, %v925
    %v1337 = vsel %vm1329, -1e+30, %v1003
    %v1338 = vsel %vm1330, -1e+30, %v1081
    %v1339 = vsel %vm1331, -1e+30, %v1159
    %v1340 = vsel %vm1332, -1e+30, %v1237
    %v1341 = vsel %vm1333, -1e+30, %v1315
    %v1342 = vsel %vm696, %v1334, -inf
    %1343 = vmax.xlane.f32.xlu0 %v1342
    %v1344 = vpop.xlane.xlu0 %1343
    %v1345 = vsel %vm696, %v1335, -inf
    %1346 = vmax.xlane.f32.xlu0 %v1345
    %v1347 = vpop.xlane.xlu0 %1346
    %v1348 = vsel %vm696, %v1336, -inf
    %1349 = vmax.xlane.f32.xlu0 %v1348
    %v1350 = vpop.xlane.xlu0 %1349
    %v1351 = vsel %vm696, %v1337, -inf
    %1352 = vmax.xlane.f32.xlu0 %v1351
    %v1353 = vpop.xlane.xlu0 %1352
    %v1354 = vsel %vm696, %v1338, -inf
    %1355 = vmax.xlane.f32.xlu0 %v1354
    %v1356 = vpop.xlane.xlu0 %1355
    %v1357 = vsel %vm696, %v1339, -inf
    %1358 = vmax.xlane.f32.xlu0 %v1357
    %v1359 = vpop.xlane.xlu0 %1358
    %v1360 = vsel %vm696, %v1340, -inf
    %1361 = vmax.xlane.f32.xlu0 %v1360
    %v1362 = vpop.xlane.xlu0 %1361
    %v1363 = vsel %vm696, %v1341, -inf
    %1364 = vmax.xlane.f32.xlu0 %v1363
    %v1365 = vpop.xlane.xlu0 %1364
    %v1366 = vsub.f32 %v1334, %v1344
    %v1367 = vsub.f32 %v1335, %v1347
    %v1368 = vsub.f32 %v1336, %v1350
    %v1369 = vsub.f32 %v1337, %v1353
    %v1370 = vsub.f32 %v1338, %v1356
    %v1371 = vsub.f32 %v1339, %v1359
    %v1372 = vsub.f32 %v1340, %v1362
    %v1373 = vsub.f32 %v1341, %v1365
    %v1374 = vmul.f32 %v1366, 1.442695
    %v1375 = vpow.pop %v1374
    %v1376 = vmul.f32 %v1367, 1.442695
    %v1377 = vpow.pop %v1376
    %v1378 = vmul.f32 %v1368, 1.442695
    %v1379 = vpow.pop %v1378
    %v1380 = vmul.f32 %v1369, 1.442695
    %v1381 = vpow.pop %v1380
    %v1382 = vmul.f32 %v1370, 1.442695
    %v1383 = vpow.pop %v1382
    %v1384 = vmul.f32 %v1371, 1.442695
    %v1385 = vpow.pop %v1384
    %v1386 = vmul.f32 %v1372, 1.442695
    %v1387 = vpow.pop %v1386
    %v1388 = vmul.f32 %v1373, 1.442695
    %v1389 = vpow.pop %v1388
    %v1390 = vsel %vm696, %v1375, 0.0
    %1391 = vadd.xlane.f32.xlu0 %v1390
    %v1392 = vpop.xlane.xlu0 %1391
    %v1393 = vsel %vm696, %v1377, 0.0
    %1394 = vadd.xlane.f32.xlu0 %v1393
    %v1395 = vpop.xlane.xlu0 %1394
    %v1396 = vsel %vm696, %v1379, 0.0
    %1397 = vadd.xlane.f32.xlu0 %v1396
    %v1398 = vpop.xlane.xlu0 %1397
    %v1399 = vsel %vm696, %v1381, 0.0
    %1400 = vadd.xlane.f32.xlu0 %v1399
    %v1401 = vpop.xlane.xlu0 %1400
    %v1402 = vsel %vm696, %v1383, 0.0
    %1403 = vadd.xlane.f32.xlu0 %v1402
    %v1404 = vpop.xlane.xlu0 %1403
    %v1405 = vsel %vm696, %v1385, 0.0
    %1406 = vadd.xlane.f32.xlu0 %v1405
    %v1407 = vpop.xlane.xlu0 %1406
    %v1408 = vsel %vm696, %v1387, 0.0
    %1409 = vadd.xlane.f32.xlu0 %v1408
    %v1410 = vpop.xlane.xlu0 %1409
    %v1411 = vsel %vm696, %v1389, 0.0
    %1412 = vadd.xlane.f32.xlu0 %v1411
    %v1413 = vpop.xlane.xlu0 %1412
    %v1414 = vrcp.pop %v1392
    %v1415 = vrcp.pop %v1395
    %v1416 = vrcp.pop %v1398
    %v1417 = vrcp.pop %v1401
    %v1418 = vrcp.pop %v1404
    %v1419 = vrcp.pop %v1407
    %v1420 = vrcp.pop %v1410
    %v1421 = vrcp.pop %v1413
    %v1422 = vmul.f32 %v1375, %v1414
    %v1423 = vmul.f32 %v1377, %v1415
    %v1424 = vmul.f32 %v1379, %v1416
    %v1425 = vmul.f32 %v1381, %v1417
    %v1426 = vmul.f32 %v1383, %v1418
    %v1427 = vmul.f32 %v1385, %v1419
    %v1428 = vmul.f32 %v1387, %v1420
    %v1429 = vmul.f32 %v1389, %v1421
    %1430 = vrot.lane.b32.xlu0 %v189, 112
    %v1431 = vpop.permute.xlu0 %1430
    %v1434 = vsel %vm696, %v1422, 0
    %1436 = vmatprep.subr.mxu0 0.0
    %1437 = vmatpush1.msra.mxu0 0.0
    %1438 = vmatprep.subr.mxu0 0.0
    %1439 = vmatpush1.msra.mxu0 0.0
    %1440 = vmatprep.subr.mxu0 0.0
    %1441 = vmatpush1.msra.mxu0 0.0
    %1442 = vmatprep.subr.mxu0 0.0
    %1443 = vmatpush1.msra.mxu0 0.0
    %1444 = vmatprep.subr.mxu0 0.0
    %1445 = vmatpush1.msra.mxu0 0.0
    %1446 = vmatprep.subr.mxu0 0.0
    %1447 = vmatpush1.msra.mxu0 0.0
    %1448 = vmatprep.subr.mxu0 0.0
    %1449 = vmatpush1.msra.mxu0 0.0
    %1450 = vmatprep.subr.mxu0 0.0
    %1451 = vmatpush1.msra.mxu0 0.0
    %1452 = vmatprep.subr.mxu0 0.0
    %1453 = vmatpush1.msra.mxu0 0.0
    %1454 = vmatprep.subr.mxu0 0.0
    %1455 = vmatpush1.msra.mxu0 0.0
    %1456 = vmatprep.subr.mxu0 0.0
    %1457 = vmatpush1.msra.mxu0 0.0
    %1458 = vmatprep.subr.mxu0 0.0
    %1459 = vmatpush1.msra.mxu0 0.0
    %1460 = vmatprep.subr.mxu0 0.0
    %1461 = vmatpush1.msra.mxu0 0.0
    %1462 = vmatprep.subr.mxu0 0.0
    %1463 = vmatpush1.msra.mxu0 0.0
    %1464 = vmatprep.subr.mxu0 0.0
    %1465 = vmatpush1.msra.mxu0 0.0
    %1466 = vmatprep.subr.mxu0 0.0
    %1467 = vmatpush1.msra.mxu0 %v1431
    %1468 = vmatprep.subr.mxu0 0.0
    %1469 = vmatpush2.msra.mxu0 0.0
    %1470 = vmatprep.subr.mxu0 0.0
    %1471 = vmatpush2.msra.mxu0 0.0
    %1472 = vmatprep.subr.mxu0 0.0
    %1473 = vmatpush2.msra.mxu0 0.0
    %1474 = vmatprep.subr.mxu0 0.0
    %1475 = vmatpush2.msra.mxu0 0.0
    %1476 = vmatprep.subr.mxu0 0.0
    %1477 = vmatpush2.msra.mxu0 0.0
    %1478 = vmatprep.subr.mxu0 0.0
    %1479 = vmatpush2.msra.mxu0 0.0
    %1480 = vmatprep.subr.mxu0 0.0
    %1481 = vmatpush2.msra.mxu0 0.0
    %1482 = vmatprep.subr.mxu0 0.0
    %1483 = vmatpush2.msra.mxu0 0.0
    %1484 = vmatprep.subr.mxu0 0.0
    %1485 = vmatpush2.msra.mxu0 0.0
    %1486 = vmatprep.subr.mxu0 0.0
    %1487 = vmatpush2.msra.mxu0 0.0
    %1488 = vmatprep.subr.mxu0 0.0
    %1489 = vmatpush2.msra.mxu0 0.0
    %1490 = vmatprep.subr.mxu0 0.0
    %1491 = vmatpush2.msra.mxu0 0.0
    %1492 = vmatprep.subr.mxu0 0.0
    %1493 = vmatpush2.msra.mxu0 0.0
    %1494 = vmatprep.subr.mxu0 0.0
    %1495 = vmatpush2.msra.mxu0 0.0
    %1496 = vmatprep.subr.mxu0 0.0
    %1497 = vmatpush2.msra.mxu0 0.0
    %1498 = vmatprep.subr.mxu0 0.0
    %1499 = vmatpush2.msra.mxu0 0.0
    %1500 = vmatprep.mubr.f32.mxu0 0.0
    %1501 = vmatmul.mubr.f32.gmra.mxu0 %v1434
    %v1502 = vpop.f32.mrf.mxu0
    %v1503 = vadd.f32 0.0, %v1502
    %v1504 = vpop.f32.mrf.mxu0
    %1505 = vdwg.mxu0
    %1506 = vrot.lane.b32.xlu0 %v262, 112
    %v1507 = vpop.permute.xlu0 %1506
    %v1510 = vsel %vm696, %v1423, 0
    %1512 = vmatprep.subr.mxu0 0.0
    %1513 = vmatpush1.msra.mxu0 0.0
    %1514 = vmatprep.subr.mxu0 0.0
    %1515 = vmatpush1.msra.mxu0 0.0
    %1516 = vmatprep.subr.mxu0 0.0
    %1517 = vmatpush1.msra.mxu0 0.0
    %1518 = vmatprep.subr.mxu0 0.0
    %1519 = vmatpush1.msra.mxu0 0.0
    %1520 = vmatprep.subr.mxu0 0.0
    %1521 = vmatpush1.msra.mxu0 0.0
    %1522 = vmatprep.subr.mxu0 0.0
    %1523 = vmatpush1.msra.mxu0 0.0
    %1524 = vmatprep.subr.mxu0 0.0
    %1525 = vmatpush1.msra.mxu0 0.0
    %1526 = vmatprep.subr.mxu0 0.0
    %1527 = vmatpush1.msra.mxu0 0.0
    %1528 = vmatprep.subr.mxu0 0.0
    %1529 = vmatpush1.msra.mxu0 0.0
    %1530 = vmatprep.subr.mxu0 0.0
    %1531 = vmatpush1.msra.mxu0 0.0
    %1532 = vmatprep.subr.mxu0 0.0
    %1533 = vmatpush1.msra.mxu0 0.0
    %1534 = vmatprep.subr.mxu0 0.0
    %1535 = vmatpush1.msra.mxu0 0.0
    %1536 = vmatprep.subr.mxu0 0.0
    %1537 = vmatpush1.msra.mxu0 0.0
    %1538 = vmatprep.subr.mxu0 0.0
    %1539 = vmatpush1.msra.mxu0 0.0
    %1540 = vmatprep.subr.mxu0 0.0
    %1541 = vmatpush1.msra.mxu0 0.0
    %1542 = vmatprep.subr.mxu0 0.0
    %1543 = vmatpush1.msra.mxu0 %v1507
    %1544 = vmatprep.subr.mxu0 0.0
    %1545 = vmatpush2.msra.mxu0 0.0
    %1546 = vmatprep.subr.mxu0 0.0
    %1547 = vmatpush2.msra.mxu0 0.0
    %1548 = vmatprep.subr.mxu0 0.0
    %1549 = vmatpush2.msra.mxu0 0.0
    %1550 = vmatprep.subr.mxu0 0.0
    %1551 = vmatpush2.msra.mxu0 0.0
    %1552 = vmatprep.subr.mxu0 0.0
    %1553 = vmatpush2.msra.mxu0 0.0
    %1554 = vmatprep.subr.mxu0 0.0
    %1555 = vmatpush2.msra.mxu0 0.0
    %1556 = vmatprep.subr.mxu0 0.0
    %1557 = vmatpush2.msra.mxu0 0.0
    %1558 = vmatprep.subr.mxu0 0.0
    %1559 = vmatpush2.msra.mxu0 0.0
    %1560 = vmatprep.subr.mxu0 0.0
    %1561 = vmatpush2.msra.mxu0 0.0
    %1562 = vmatprep.subr.mxu0 0.0
    %1563 = vmatpush2.msra.mxu0 0.0
    %1564 = vmatprep.subr.mxu0 0.0
    %1565 = vmatpush2.msra.mxu0 0.0
    %1566 = vmatprep.subr.mxu0 0.0
    %1567 = vmatpush2.msra.mxu0 0.0
    %1568 = vmatprep.subr.mxu0 0.0
    %1569 = vmatpush2.msra.mxu0 0.0
    %1570 = vmatprep.subr.mxu0 0.0
    %1571 = vmatpush2.msra.mxu0 0.0
    %1572 = vmatprep.subr.mxu0 0.0
    %1573 = vmatpush2.msra.mxu0 0.0
    %1574 = vmatprep.subr.mxu0 0.0
    %1575 = vmatpush2.msra.mxu0 0.0
    %1576 = vmatprep.mubr.f32.mxu0 0.0
    %1577 = vmatmul.mubr.f32.gmra.mxu0 %v1510
    %v1578 = vpop.f32.mrf.mxu0
    %v1579 = vadd.f32 0.0, %v1578
    %v1580 = vpop.f32.mrf.mxu0
    %1581 = vdwg.mxu0
    %1582 = vrot.lane.b32.xlu0 %v332, 112
    %v1583 = vpop.permute.xlu0 %1582
    %v1586 = vsel %vm696, %v1424, 0
    %1588 = vmatprep.subr.mxu0 0.0
    %1589 = vmatpush1.msra.mxu0 0.0
    %1590 = vmatprep.subr.mxu0 0.0
    %1591 = vmatpush1.msra.mxu0 0.0
    %1592 = vmatprep.subr.mxu0 0.0
    %1593 = vmatpush1.msra.mxu0 0.0
    %1594 = vmatprep.subr.mxu0 0.0
    %1595 = vmatpush1.msra.mxu0 0.0
    %1596 = vmatprep.subr.mxu0 0.0
    %1597 = vmatpush1.msra.mxu0 0.0
    %1598 = vmatprep.subr.mxu0 0.0
    %1599 = vmatpush1.msra.mxu0 0.0
    %1600 = vmatprep.subr.mxu0 0.0
    %1601 = vmatpush1.msra.mxu0 0.0
    %1602 = vmatprep.subr.mxu0 0.0
    %1603 = vmatpush1.msra.mxu0 0.0
    %1604 = vmatprep.subr.mxu0 0.0
    %1605 = vmatpush1.msra.mxu0 0.0
    %1606 = vmatprep.subr.mxu0 0.0
    %1607 = vmatpush1.msra.mxu0 0.0
    %1608 = vmatprep.subr.mxu0 0.0
    %1609 = vmatpush1.msra.mxu0 0.0
    %1610 = vmatprep.subr.mxu0 0.0
    %1611 = vmatpush1.msra.mxu0 0.0
    %1612 = vmatprep.subr.mxu0 0.0
    %1613 = vmatpush1.msra.mxu0 0.0
    %1614 = vmatprep.subr.mxu0 0.0
    %1615 = vmatpush1.msra.mxu0 0.0
    %1616 = vmatprep.subr.mxu0 0.0
    %1617 = vmatpush1.msra.mxu0 0.0
    %1618 = vmatprep.subr.mxu0 0.0
    %1619 = vmatpush1.msra.mxu0 %v1583
    %1620 = vmatprep.subr.mxu0 0.0
    %1621 = vmatpush2.msra.mxu0 0.0
    %1622 = vmatprep.subr.mxu0 0.0
    %1623 = vmatpush2.msra.mxu0 0.0
    %1624 = vmatprep.subr.mxu0 0.0
    %1625 = vmatpush2.msra.mxu0 0.0
    %1626 = vmatprep.subr.mxu0 0.0
    %1627 = vmatpush2.msra.mxu0 0.0
    %1628 = vmatprep.subr.mxu0 0.0
    %1629 = vmatpush2.msra.mxu0 0.0
    %1630 = vmatprep.subr.mxu0 0.0
    %1631 = vmatpush2.msra.mxu0 0.0
    %1632 = vmatprep.subr.mxu0 0.0
    %1633 = vmatpush2.msra.mxu0 0.0
    %1634 = vmatprep.subr.mxu0 0.0
    %1635 = vmatpush2.msra.mxu0 0.0
    %1636 = vmatprep.subr.mxu0 0.0
    %1637 = vmatpush2.msra.mxu0 0.0
    %1638 = vmatprep.subr.mxu0 0.0
    %1639 = vmatpush2.msra.mxu0 0.0
    %1640 = vmatprep.subr.mxu0 0.0
    %1641 = vmatpush2.msra.mxu0 0.0
    %1642 = vmatprep.subr.mxu0 0.0
    %1643 = vmatpush2.msra.mxu0 0.0
    %1644 = vmatprep.subr.mxu0 0.0
    %1645 = vmatpush2.msra.mxu0 0.0
    %1646 = vmatprep.subr.mxu0 0.0
    %1647 = vmatpush2.msra.mxu0 0.0
    %1648 = vmatprep.subr.mxu0 0.0
    %1649 = vmatpush2.msra.mxu0 0.0
    %1650 = vmatprep.subr.mxu0 0.0
    %1651 = vmatpush2.msra.mxu0 0.0
    %1652 = vmatprep.mubr.f32.mxu0 0.0
    %1653 = vmatmul.mubr.f32.gmra.mxu0 %v1586
    %v1654 = vpop.f32.mrf.mxu0
    %v1655 = vadd.f32 0.0, %v1654
    %v1656 = vpop.f32.mrf.mxu0
    %1657 = vdwg.mxu0
    %1658 = vrot.lane.b32.xlu0 %v402, 112
    %v1659 = vpop.permute.xlu0 %1658
    %v1662 = vsel %vm696, %v1425, 0
    %1664 = vmatprep.subr.mxu0 0.0
    %1665 = vmatpush1.msra.mxu0 0.0
    %1666 = vmatprep.subr.mxu0 0.0
    %1667 = vmatpush1.msra.mxu0 0.0
    %1668 = vmatprep.subr.mxu0 0.0
    %1669 = vmatpush1.msra.mxu0 0.0
    %1670 = vmatprep.subr.mxu0 0.0
    %1671 = vmatpush1.msra.mxu0 0.0
    %1672 = vmatprep.subr.mxu0 0.0
    %1673 = vmatpush1.msra.mxu0 0.0
    %1674 = vmatprep.subr.mxu0 0.0
    %1675 = vmatpush1.msra.mxu0 0.0
    %1676 = vmatprep.subr.mxu0 0.0
    %1677 = vmatpush1.msra.mxu0 0.0
    %1678 = vmatprep.subr.mxu0 0.0
    %1679 = vmatpush1.msra.mxu0 0.0
    %1680 = vmatprep.subr.mxu0 0.0
    %1681 = vmatpush1.msra.mxu0 0.0
    %1682 = vmatprep.subr.mxu0 0.0
    %1683 = vmatpush1.msra.mxu0 0.0
    %1684 = vmatprep.subr.mxu0 0.0
    %1685 = vmatpush1.msra.mxu0 0.0
    %1686 = vmatprep.subr.mxu0 0.0
    %1687 = vmatpush1.msra.mxu0 0.0
    %1688 = vmatprep.subr.mxu0 0.0
    %1689 = vmatpush1.msra.mxu0 0.0
    %1690 = vmatprep.subr.mxu0 0.0
    %1691 = vmatpush1.msra.mxu0 0.0
    %1692 = vmatprep.subr.mxu0 0.0
    %1693 = vmatpush1.msra.mxu0 0.0
    %1694 = vmatprep.subr.mxu0 0.0
    %1695 = vmatpush1.msra.mxu0 %v1659
    %1696 = vmatprep.subr.mxu0 0.0
    %1697 = vmatpush2.msra.mxu0 0.0
    %1698 = vmatprep.subr.mxu0 0.0
    %1699 = vmatpush2.msra.mxu0 0.0
    %1700 = vmatprep.subr.mxu0 0.0
    %1701 = vmatpush2.msra.mxu0 0.0
    %1702 = vmatprep.subr.mxu0 0.0
    %1703 = vmatpush2.msra.mxu0 0.0
    %1704 = vmatprep.subr.mxu0 0.0
    %1705 = vmatpush2.msra.mxu0 0.0
    %1706 = vmatprep.subr.mxu0 0.0
    %1707 = vmatpush2.msra.mxu0 0.0
    %1708 = vmatprep.subr.mxu0 0.0
    %1709 = vmatpush2.msra.mxu0 0.0
    %1710 = vmatprep.subr.mxu0 0.0
    %1711 = vmatpush2.msra.mxu0 0.0
    %1712 = vmatprep.subr.mxu0 0.0
    %1713 = vmatpush2.msra.mxu0 0.0
    %1714 = vmatprep.subr.mxu0 0.0
    %1715 = vmatpush2.msra.mxu0 0.0
    %1716 = vmatprep.subr.mxu0 0.0
    %1717 = vmatpush2.msra.mxu0 0.0
    %1718 = vmatprep.subr.mxu0 0.0
    %1719 = vmatpush2.msra.mxu0 0.0
    %1720 = vmatprep.subr.mxu0 0.0
    %1721 = vmatpush2.msra.mxu0 0.0
    %1722 = vmatprep.subr.mxu0 0.0
    %1723 = vmatpush2.msra.mxu0 0.0
    %1724 = vmatprep.subr.mxu0 0.0
    %1725 = vmatpush2.msra.mxu0 0.0
    %1726 = vmatprep.subr.mxu0 0.0
    %1727 = vmatpush2.msra.mxu0 0.0
    %1728 = vmatprep.mubr.f32.mxu0 0.0
    %1729 = vmatmul.mubr.f32.gmra.mxu0 %v1662
    %v1730 = vpop.f32.mrf.mxu0
    %v1731 = vadd.f32 0.0, %v1730
    %v1732 = vpop.f32.mrf.mxu0
    %1733 = vdwg.mxu0
    %1734 = vrot.lane.b32.xlu0 %v472, 112
    %v1735 = vpop.permute.xlu0 %1734
    %v1738 = vsel %vm696, %v1426, 0
    %1740 = vmatprep.subr.mxu0 0.0
    %1741 = vmatpush1.msra.mxu0 0.0
    %1742 = vmatprep.subr.mxu0 0.0
    %1743 = vmatpush1.msra.mxu0 0.0
    %1744 = vmatprep.subr.mxu0 0.0
    %1745 = vmatpush1.msra.mxu0 0.0
    %1746 = vmatprep.subr.mxu0 0.0
    %1747 = vmatpush1.msra.mxu0 0.0
    %1748 = vmatprep.subr.mxu0 0.0
    %1749 = vmatpush1.msra.mxu0 0.0
    %1750 = vmatprep.subr.mxu0 0.0
    %1751 = vmatpush1.msra.mxu0 0.0
    %1752 = vmatprep.subr.mxu0 0.0
    %1753 = vmatpush1.msra.mxu0 0.0
    %1754 = vmatprep.subr.mxu0 0.0
    %1755 = vmatpush1.msra.mxu0 0.0
    %1756 = vmatprep.subr.mxu0 0.0
    %1757 = vmatpush1.msra.mxu0 0.0
    %1758 = vmatprep.subr.mxu0 0.0
    %1759 = vmatpush1.msra.mxu0 0.0
    %1760 = vmatprep.subr.mxu0 0.0
    %1761 = vmatpush1.msra.mxu0 0.0
    %1762 = vmatprep.subr.mxu0 0.0
    %1763 = vmatpush1.msra.mxu0 0.0
    %1764 = vmatprep.subr.mxu0 0.0
    %1765 = vmatpush1.msra.mxu0 0.0
    %1766 = vmatprep.subr.mxu0 0.0
    %1767 = vmatpush1.msra.mxu0 0.0
    %1768 = vmatprep.subr.mxu0 0.0
    %1769 = vmatpush1.msra.mxu0 0.0
    %1770 = vmatprep.subr.mxu0 0.0
    %1771 = vmatpush1.msra.mxu0 %v1735
    %1772 = vmatprep.subr.mxu0 0.0
    %1773 = vmatpush2.msra.mxu0 0.0
    %1774 = vmatprep.subr.mxu0 0.0
    %1775 = vmatpush2.msra.mxu0 0.0
    %1776 = vmatprep.subr.mxu0 0.0
    %1777 = vmatpush2.msra.mxu0 0.0
    %1778 = vmatprep.subr.mxu0 0.0
    %1779 = vmatpush2.msra.mxu0 0.0
    %1780 = vmatprep.subr.mxu0 0.0
    %1781 = vmatpush2.msra.mxu0 0.0
    %1782 = vmatprep.subr.mxu0 0.0
    %1783 = vmatpush2.msra.mxu0 0.0
    %1784 = vmatprep.subr.mxu0 0.0
    %1785 = vmatpush2.msra.mxu0 0.0
    %1786 = vmatprep.subr.mxu0 0.0
    %1787 = vmatpush2.msra.mxu0 0.0
    %1788 = vmatprep.subr.mxu0 0.0
    %1789 = vmatpush2.msra.mxu0 0.0
    %1790 = vmatprep.subr.mxu0 0.0
    %1791 = vmatpush2.msra.mxu0 0.0
    %1792 = vmatprep.subr.mxu0 0.0
    %1793 = vmatpush2.msra.mxu0 0.0
    %1794 = vmatprep.subr.mxu0 0.0
    %1795 = vmatpush2.msra.mxu0 0.0
    %1796 = vmatprep.subr.mxu0 0.0
    %1797 = vmatpush2.msra.mxu0 0.0
    %1798 = vmatprep.subr.mxu0 0.0
    %1799 = vmatpush2.msra.mxu0 0.0
    %1800 = vmatprep.subr.mxu0 0.0
    %1801 = vmatpush2.msra.mxu0 0.0
    %1802 = vmatprep.subr.mxu0 0.0
    %1803 = vmatpush2.msra.mxu0 0.0
    %1804 = vmatprep.mubr.f32.mxu0 0.0
    %1805 = vmatmul.mubr.f32.gmra.mxu0 %v1738
    %v1806 = vpop.f32.mrf.mxu0
    %v1807 = vadd.f32 0.0, %v1806
    %v1808 = vpop.f32.mrf.mxu0
    %1809 = vdwg.mxu0
    %1810 = vrot.lane.b32.xlu0 %v542, 112
    %v1811 = vpop.permute.xlu0 %1810
    %v1814 = vsel %vm696, %v1427, 0
    %1816 = vmatprep.subr.mxu0 0.0
    %1817 = vmatpush1.msra.mxu0 0.0
    %1818 = vmatprep.subr.mxu0 0.0
    %1819 = vmatpush1.msra.mxu0 0.0
    %1820 = vmatprep.subr.mxu0 0.0
    %1821 = vmatpush1.msra.mxu0 0.0
    %1822 = vmatprep.subr.mxu0 0.0
    %1823 = vmatpush1.msra.mxu0 0.0
    %1824 = vmatprep.subr.mxu0 0.0
    %1825 = vmatpush1.msra.mxu0 0.0
    %1826 = vmatprep.subr.mxu0 0.0
    %1827 = vmatpush1.msra.mxu0 0.0
    %1828 = vmatprep.subr.mxu0 0.0
    %1829 = vmatpush1.msra.mxu0 0.0
    %1830 = vmatprep.subr.mxu0 0.0
    %1831 = vmatpush1.msra.mxu0 0.0
    %1832 = vmatprep.subr.mxu0 0.0
    %1833 = vmatpush1.msra.mxu0 0.0
    %1834 = vmatprep.subr.mxu0 0.0
    %1835 = vmatpush1.msra.mxu0 0.0
    %1836 = vmatprep.subr.mxu0 0.0
    %1837 = vmatpush1.msra.mxu0 0.0
    %1838 = vmatprep.subr.mxu0 0.0
    %1839 = vmatpush1.msra.mxu0 0.0
    %1840 = vmatprep.subr.mxu0 0.0
    %1841 = vmatpush1.msra.mxu0 0.0
    %1842 = vmatprep.subr.mxu0 0.0
    %1843 = vmatpush1.msra.mxu0 0.0
    %1844 = vmatprep.subr.mxu0 0.0
    %1845 = vmatpush1.msra.mxu0 0.0
    %1846 = vmatprep.subr.mxu0 0.0
    %1847 = vmatpush1.msra.mxu0 %v1811
    %1848 = vmatprep.subr.mxu0 0.0
    %1849 = vmatpush2.msra.mxu0 0.0
    %1850 = vmatprep.subr.mxu0 0.0
    %1851 = vmatpush2.msra.mxu0 0.0
    %1852 = vmatprep.subr.mxu0 0.0
    %1853 = vmatpush2.msra.mxu0 0.0
    %1854 = vmatprep.subr.mxu0 0.0
    %1855 = vmatpush2.msra.mxu0 0.0
    %1856 = vmatprep.subr.mxu0 0.0
    %1857 = vmatpush2.msra.mxu0 0.0
    %1858 = vmatprep.subr.mxu0 0.0
    %1859 = vmatpush2.msra.mxu0 0.0
    %1860 = vmatprep.subr.mxu0 0.0
    %1861 = vmatpush2.msra.mxu0 0.0
    %1862 = vmatprep.subr.mxu0 0.0
    %1863 = vmatpush2.msra.mxu0 0.0
    %1864 = vmatprep.subr.mxu0 0.0
    %1865 = vmatpush2.msra.mxu0 0.0
    %1866 = vmatprep.subr.mxu0 0.0
    %1867 = vmatpush2.msra.mxu0 0.0
    %1868 = vmatprep.subr.mxu0 0.0
    %1869 = vmatpush2.msra.mxu0 0.0
    %1870 = vmatprep.subr.mxu0 0.0
    %1871 = vmatpush2.msra.mxu0 0.0
    %1872 = vmatprep.subr.mxu0 0.0
    %1873 = vmatpush2.msra.mxu0 0.0
    %1874 = vmatprep.subr.mxu0 0.0
    %1875 = vmatpush2.msra.mxu0 0.0
    %1876 = vmatprep.subr.mxu0 0.0
    %1877 = vmatpush2.msra.mxu0 0.0
    %1878 = vmatprep.subr.mxu0 0.0
    %1879 = vmatpush2.msra.mxu0 0.0
    %1880 = vmatprep.mubr.f32.mxu0 0.0
    %1881 = vmatmul.mubr.f32.gmra.mxu0 %v1814
    %v1882 = vpop.f32.mrf.mxu0
    %v1883 = vadd.f32 0.0, %v1882
    %v1884 = vpop.f32.mrf.mxu0
    %1885 = vdwg.mxu0
    %1886 = vrot.lane.b32.xlu0 %v612, 112
    %v1887 = vpop.permute.xlu0 %1886
    %v1890 = vsel %vm696, %v1428, 0
    %1892 = vmatprep.subr.mxu0 0.0
    %1893 = vmatpush1.msra.mxu0 0.0
    %1894 = vmatprep.subr.mxu0 0.0
    %1895 = vmatpush1.msra.mxu0 0.0
    %1896 = vmatprep.subr.mxu0 0.0
    %1897 = vmatpush1.msra.mxu0 0.0
    %1898 = vmatprep.subr.mxu0 0.0
    %1899 = vmatpush1.msra.mxu0 0.0
    %1900 = vmatprep.subr.mxu0 0.0
    %1901 = vmatpush1.msra.mxu0 0.0
    %1902 = vmatprep.subr.mxu0 0.0
    %1903 = vmatpush1.msra.mxu0 0.0
    %1904 = vmatprep.subr.mxu0 0.0
    %1905 = vmatpush1.msra.mxu0 0.0
    %1906 = vmatprep.subr.mxu0 0.0
    %1907 = vmatpush1.msra.mxu0 0.0
    %1908 = vmatprep.subr.mxu0 0.0
    %1909 = vmatpush1.msra.mxu0 0.0
    %1910 = vmatprep.subr.mxu0 0.0
    %1911 = vmatpush1.msra.mxu0 0.0
    %1912 = vmatprep.subr.mxu0 0.0
    %1913 = vmatpush1.msra.mxu0 0.0
    %1914 = vmatprep.subr.mxu0 0.0
    %1915 = vmatpush1.msra.mxu0 0.0
    %1916 = vmatprep.subr.mxu0 0.0
    %1917 = vmatpush1.msra.mxu0 0.0
    %1918 = vmatprep.subr.mxu0 0.0
    %1919 = vmatpush1.msra.mxu0 0.0
    %1920 = vmatprep.subr.mxu0 0.0
    %1921 = vmatpush1.msra.mxu0 0.0
    %1922 = vmatprep.subr.mxu0 0.0
    %1923 = vmatpush1.msra.mxu0 %v1887
    %1924 = vmatprep.subr.mxu0 0.0
    %1925 = vmatpush2.msra.mxu0 0.0
    %1926 = vmatprep.subr.mxu0 0.0
    %1927 = vmatpush2.msra.mxu0 0.0
    %1928 = vmatprep.subr.mxu0 0.0
    %1929 = vmatpush2.msra.mxu0 0.0
    %1930 = vmatprep.subr.mxu0 0.0
    %1931 = vmatpush2.msra.mxu0 0.0
    %1932 = vmatprep.subr.mxu0 0.0
    %1933 = vmatpush2.msra.mxu0 0.0
    %1934 = vmatprep.subr.mxu0 0.0
    %1935 = vmatpush2.msra.mxu0 0.0
    %1936 = vmatprep.subr.mxu0 0.0
    %1937 = vmatpush2.msra.mxu0 0.0
    %1938 = vmatprep.subr.mxu0 0.0
    %1939 = vmatpush2.msra.mxu0 0.0
    %1940 = vmatprep.subr.mxu0 0.0
    %1941 = vmatpush2.msra.mxu0 0.0
    %1942 = vmatprep.subr.mxu0 0.0
    %1943 = vmatpush2.msra.mxu0 0.0
    %1944 = vmatprep.subr.mxu0 0.0
    %1945 = vmatpush2.msra.mxu0 0.0
    %1946 = vmatprep.subr.mxu0 0.0
    %1947 = vmatpush2.msra.mxu0 0.0
    %1948 = vmatprep.subr.mxu0 0.0
    %1949 = vmatpush2.msra.mxu0 0.0
    %1950 = vmatprep.subr.mxu0 0.0
    %1951 = vmatpush2.msra.mxu0 0.0
    %1952 = vmatprep.subr.mxu0 0.0
    %1953 = vmatpush2.msra.mxu0 0.0
    %1954 = vmatprep.subr.mxu0 0.0
    %1955 = vmatpush2.msra.mxu0 0.0
    %1956 = vmatprep.mubr.f32.mxu0 0.0
    %1957 = vmatmul.mubr.f32.gmra.mxu0 %v1890
    %v1958 = vpop.f32.mrf.mxu0
    %v1959 = vadd.f32 0.0, %v1958
    %v1960 = vpop.f32.mrf.mxu0
    %1961 = vdwg.mxu0
    %1962 = vrot.lane.b32.xlu0 %v682, 112
    %v1963 = vpop.permute.xlu0 %1962
    %v1966 = vsel %vm696, %v1429, 0
    %1968 = vmatprep.subr.mxu0 0.0
    %1969 = vmatpush1.msra.mxu0 0.0
    %1970 = vmatprep.subr.mxu0 0.0
    %1971 = vmatpush1.msra.mxu0 0.0
    %1972 = vmatprep.subr.mxu0 0.0
    %1973 = vmatpush1.msra.mxu0 0.0
    %1974 = vmatprep.subr.mxu0 0.0
    %1975 = vmatpush1.msra.mxu0 0.0
    %1976 = vmatprep.subr.mxu0 0.0
    %1977 = vmatpush1.msra.mxu0 0.0
    %1978 = vmatprep.subr.mxu0 0.0
    %1979 = vmatpush1.msra.mxu0 0.0
    %1980 = vmatprep.subr.mxu0 0.0
    %1981 = vmatpush1.msra.mxu0 0.0
    %1982 = vmatprep.subr.mxu0 0.0
    %1983 = vmatpush1.msra.mxu0 0.0
    %1984 = vmatprep.subr.mxu0 0.0
    %1985 = vmatpush1.msra.mxu0 0.0
    %1986 = vmatprep.subr.mxu0 0.0
    %1987 = vmatpush1.msra.mxu0 0.0
    %1988 = vmatprep.subr.mxu0 0.0
    %1989 = vmatpush1.msra.mxu0 0.0
    %1990 = vmatprep.subr.mxu0 0.0
    %1991 = vmatpush1.msra.mxu0 0.0
    %1992 = vmatprep.subr.mxu0 0.0
    %1993 = vmatpush1.msra.mxu0 0.0
    %1994 = vmatprep.subr.mxu0 0.0
    %1995 = vmatpush1.msra.mxu0 0.0
    %1996 = vmatprep.subr.mxu0 0.0
    %1997 = vmatpush1.msra.mxu0 0.0
    %1998 = vmatprep.subr.mxu0 0.0
    %1999 = vmatpush1.msra.mxu0 %v1963
    %2000 = vmatprep.subr.mxu0 0.0
    %2001 = vmatpush2.msra.mxu0 0.0
    %2002 = vmatprep.subr.mxu0 0.0
    %2003 = vmatpush2.msra.mxu0 0.0
    %2004 = vmatprep.subr.mxu0 0.0
    %2005 = vmatpush2.msra.mxu0 0.0
    %2006 = vmatprep.subr.mxu0 0.0
    %2007 = vmatpush2.msra.mxu0 0.0
    %2008 = vmatprep.subr.mxu0 0.0
    %2009 = vmatpush2.msra.mxu0 0.0
    %2010 = vmatprep.subr.mxu0 0.0
    %2011 = vmatpush2.msra.mxu0 0.0
    %2012 = vmatprep.subr.mxu0 0.0
    %2013 = vmatpush2.msra.mxu0 0.0
    %2014 = vmatprep.subr.mxu0 0.0
    %2015 = vmatpush2.msra.mxu0 0.0
    %2016 = vmatprep.subr.mxu0 0.0
    %2017 = vmatpush2.msra.mxu0 0.0
    %2018 = vmatprep.subr.mxu0 0.0
    %2019 = vmatpush2.msra.mxu0 0.0
    %2020 = vmatprep.subr.mxu0 0.0
    %2021 = vmatpush2.msra.mxu0 0.0
    %2022 = vmatprep.subr.mxu0 0.0
    %2023 = vmatpush2.msra.mxu0 0.0
    %2024 = vmatprep.subr.mxu0 0.0
    %2025 = vmatpush2.msra.mxu0 0.0
    %2026 = vmatprep.subr.mxu0 0.0
    %2027 = vmatpush2.msra.mxu0 0.0
    %2028 = vmatprep.subr.mxu0 0.0
    %2029 = vmatpush2.msra.mxu0 0.0
    %2030 = vmatprep.subr.mxu0 0.0
    %2031 = vmatpush2.msra.mxu0 0.0
    %2032 = vmatprep.mubr.f32.mxu0 0.0
    %2033 = vmatmul.mubr.f32.gmra.mxu0 %v1966
    %v2034 = vpop.f32.mrf.mxu0
    %v2035 = vadd.f32 0.0, %v2034
    %v2036 = vpop.f32.mrf.mxu0
    %2037 = vdwg.mxu0
    %v2038 = vld [vmem:[%s5] sm:$0xff]
    %v2039 = vld [vmem:[%s5 + $0x8] sm:$0xff]
    %v2040 = vld [vmem:[%s5 + $0x10] sm:$0xff]
    %v2041 = vld [vmem:[%s5 + $0x18] sm:$0xff]
    %v2042 = vld [vmem:[%s5 + $0x20] sm:$0xff]
    %v2043 = vld [vmem:[%s5 + $0x28] sm:$0xff]
    %v2044 = vld [vmem:[%s5 + $0x30] sm:$0xff]
    %v2045 = vld [vmem:[%s5 + $0x38] sm:$0xff]
    %v2047 = vsel %vm696, %v1503, 0
    %2049 = vmatprep.subr.mxu0 0.0
    %2050 = vmatpush1.msra.mxu0 0.0
    %2051 = vmatprep.subr.mxu0 0.0
    %2052 = vmatpush1.msra.mxu0 0.0
    %2053 = vmatprep.subr.mxu0 0.0
    %2054 = vmatpush1.msra.mxu0 0.0
    %2055 = vmatprep.subr.mxu0 0.0
    %2056 = vmatpush1.msra.mxu0 0.0
    %2057 = vmatprep.subr.mxu0 0.0
    %2058 = vmatpush1.msra.mxu0 0.0
    %2059 = vmatprep.subr.mxu0 0.0
    %2060 = vmatpush1.msra.mxu0 0.0
    %2061 = vmatprep.subr.mxu0 0.0
    %2062 = vmatpush1.msra.mxu0 0.0
    %2063 = vmatprep.subr.mxu0 0.0
    %2064 = vmatpush1.msra.mxu0 0.0
    %2065 = vmatprep.subr.mxu0 0.0
    %2066 = vmatpush1.msra.mxu0 0.0
    %2067 = vmatprep.subr.mxu0 0.0
    %2068 = vmatpush1.msra.mxu0 0.0
    %2069 = vmatprep.subr.mxu0 0.0
    %2070 = vmatpush1.msra.mxu0 0.0
    %2071 = vmatprep.subr.mxu0 0.0
    %2072 = vmatpush1.msra.mxu0 0.0
    %2073 = vmatprep.subr.mxu0 0.0
    %2074 = vmatpush1.msra.mxu0 0.0
    %2075 = vmatprep.subr.mxu0 0.0
    %2076 = vmatpush1.msra.mxu0 0.0
    %2077 = vmatprep.subr.mxu0 0.0
    %2078 = vmatpush1.msra.mxu0 0.0
    %2079 = vmatprep.subr.mxu0 0.0
    %2080 = vmatpush1.msra.mxu0 %v2038
    %2081 = vmatprep.subr.mxu0 0.0
    %2082 = vmatpush2.msra.mxu0 0.0
    %2083 = vmatprep.subr.mxu0 0.0
    %2084 = vmatpush2.msra.mxu0 0.0
    %2085 = vmatprep.subr.mxu0 0.0
    %2086 = vmatpush2.msra.mxu0 0.0
    %2087 = vmatprep.subr.mxu0 0.0
    %2088 = vmatpush2.msra.mxu0 0.0
    %2089 = vmatprep.subr.mxu0 0.0
    %2090 = vmatpush2.msra.mxu0 0.0
    %2091 = vmatprep.subr.mxu0 0.0
    %2092 = vmatpush2.msra.mxu0 0.0
    %2093 = vmatprep.subr.mxu0 0.0
    %2094 = vmatpush2.msra.mxu0 0.0
    %2095 = vmatprep.subr.mxu0 0.0
    %2096 = vmatpush2.msra.mxu0 0.0
    %2097 = vmatprep.subr.mxu0 0.0
    %2098 = vmatpush2.msra.mxu0 0.0
    %2099 = vmatprep.subr.mxu0 0.0
    %2100 = vmatpush2.msra.mxu0 0.0
    %2101 = vmatprep.subr.mxu0 0.0
    %2102 = vmatpush2.msra.mxu0 0.0
    %2103 = vmatprep.subr.mxu0 0.0
    %2104 = vmatpush2.msra.mxu0 0.0
    %2105 = vmatprep.subr.mxu0 0.0
    %2106 = vmatpush2.msra.mxu0 0.0
    %2107 = vmatprep.subr.mxu0 0.0
    %2108 = vmatpush2.msra.mxu0 0.0
    %2109 = vmatprep.subr.mxu0 0.0
    %2110 = vmatpush2.msra.mxu0 0.0
    %2111 = vmatprep.subr.mxu0 0.0
    %2112 = vmatpush2.msra.mxu0 0.0
    %2113 = vmatprep.mubr.f32.mxu0 0.0
    %2114 = vmatmul.mubr.f32.gmra.mxu0 %v2047
    %v2115 = vpop.f32.mrf.mxu0
    %v2116 = vadd.f32 0.0, %v2115
    %v2117 = vpop.f32.mrf.mxu0
    %2118 = vdwg.mxu0
    %v2120 = vsel %vm696, %v1579, 0
    %2122 = vmatprep.subr.mxu0 0.0
    %2123 = vmatpush1.msra.mxu0 0.0
    %2124 = vmatprep.subr.mxu0 0.0
    %2125 = vmatpush1.msra.mxu0 0.0
    %2126 = vmatprep.subr.mxu0 0.0
    %2127 = vmatpush1.msra.mxu0 0.0
    %2128 = vmatprep.subr.mxu0 0.0
    %2129 = vmatpush1.msra.mxu0 0.0
    %2130 = vmatprep.subr.mxu0 0.0
    %2131 = vmatpush1.msra.mxu0 0.0
    %2132 = vmatprep.subr.mxu0 0.0
    %2133 = vmatpush1.msra.mxu0 0.0
    %2134 = vmatprep.subr.mxu0 0.0
    %2135 = vmatpush1.msra.mxu0 0.0
    %2136 = vmatprep.subr.mxu0 0.0
    %2137 = vmatpush1.msra.mxu0 0.0
    %2138 = vmatprep.subr.mxu0 0.0
    %2139 = vmatpush1.msra.mxu0 0.0
    %2140 = vmatprep.subr.mxu0 0.0
    %2141 = vmatpush1.msra.mxu0 0.0
    %2142 = vmatprep.subr.mxu0 0.0
    %2143 = vmatpush1.msra.mxu0 0.0
    %2144 = vmatprep.subr.mxu0 0.0
    %2145 = vmatpush1.msra.mxu0 0.0
    %2146 = vmatprep.subr.mxu0 0.0
    %2147 = vmatpush1.msra.mxu0 0.0
    %2148 = vmatprep.subr.mxu0 0.0
    %2149 = vmatpush1.msra.mxu0 0.0
    %2150 = vmatprep.subr.mxu0 0.0
    %2151 = vmatpush1.msra.mxu0 0.0
    %2152 = vmatprep.subr.mxu0 0.0
    %2153 = vmatpush1.msra.mxu0 %v2039
    %2154 = vmatprep.subr.mxu0 0.0
    %2155 = vmatpush2.msra.mxu0 0.0
    %2156 = vmatprep.subr.mxu0 0.0
    %2157 = vmatpush2.msra.mxu0 0.0
    %2158 = vmatprep.subr.mxu0 0.0
    %2159 = vmatpush2.msra.mxu0 0.0
    %2160 = vmatprep.subr.mxu0 0.0
    %2161 = vmatpush2.msra.mxu0 0.0
    %2162 = vmatprep.subr.mxu0 0.0
    %2163 = vmatpush2.msra.mxu0 0.0
    %2164 = vmatprep.subr.mxu0 0.0
    %2165 = vmatpush2.msra.mxu0 0.0
    %2166 = vmatprep.subr.mxu0 0.0
    %2167 = vmatpush2.msra.mxu0 0.0
    %2168 = vmatprep.subr.mxu0 0.0
    %2169 = vmatpush2.msra.mxu0 0.0
    %2170 = vmatprep.subr.mxu0 0.0
    %2171 = vmatpush2.msra.mxu0 0.0
    %2172 = vmatprep.subr.mxu0 0.0
    %2173 = vmatpush2.msra.mxu0 0.0
    %2174 = vmatprep.subr.mxu0 0.0
    %2175 = vmatpush2.msra.mxu0 0.0
    %2176 = vmatprep.subr.mxu0 0.0
    %2177 = vmatpush2.msra.mxu0 0.0
    %2178 = vmatprep.subr.mxu0 0.0
    %2179 = vmatpush2.msra.mxu0 0.0
    %2180 = vmatprep.subr.mxu0 0.0
    %2181 = vmatpush2.msra.mxu0 0.0
    %2182 = vmatprep.subr.mxu0 0.0
    %2183 = vmatpush2.msra.mxu0 0.0
    %2184 = vmatprep.subr.mxu0 0.0
    %2185 = vmatpush2.msra.mxu0 0.0
    %2186 = vmatprep.mubr.f32.mxu0 0.0
    %2187 = vmatmul.mubr.f32.gmra.mxu0 %v2120
    %v2188 = vpop.f32.mrf.mxu0
    %v2189 = vadd.f32 0.0, %v2188
    %v2190 = vpop.f32.mrf.mxu0
    %2191 = vdwg.mxu0
    %v2193 = vsel %vm696, %v1655, 0
    %2195 = vmatprep.subr.mxu0 0.0
    %2196 = vmatpush1.msra.mxu0 0.0
    %2197 = vmatprep.subr.mxu0 0.0
    %2198 = vmatpush1.msra.mxu0 0.0
    %2199 = vmatprep.subr.mxu0 0.0
    %2200 = vmatpush1.msra.mxu0 0.0
    %2201 = vmatprep.subr.mxu0 0.0
    %2202 = vmatpush1.msra.mxu0 0.0
    %2203 = vmatprep.subr.mxu0 0.0
    %2204 = vmatpush1.msra.mxu0 0.0
    %2205 = vmatprep.subr.mxu0 0.0
    %2206 = vmatpush1.msra.mxu0 0.0
    %2207 = vmatprep.subr.mxu0 0.0
    %2208 = vmatpush1.msra.mxu0 0.0
    %2209 = vmatprep.subr.mxu0 0.0
    %2210 = vmatpush1.msra.mxu0 0.0
    %2211 = vmatprep.subr.mxu0 0.0
    %2212 = vmatpush1.msra.mxu0 0.0
    %2213 = vmatprep.subr.mxu0 0.0
    %2214 = vmatpush1.msra.mxu0 0.0
    %2215 = vmatprep.subr.mxu0 0.0
    %2216 = vmatpush1.msra.mxu0 0.0
    %2217 = vmatprep.subr.mxu0 0.0
    %2218 = vmatpush1.msra.mxu0 0.0
    %2219 = vmatprep.subr.mxu0 0.0
    %2220 = vmatpush1.msra.mxu0 0.0
    %2221 = vmatprep.subr.mxu0 0.0
    %2222 = vmatpush1.msra.mxu0 0.0
    %2223 = vmatprep.subr.mxu0 0.0
    %2224 = vmatpush1.msra.mxu0 0.0
    %2225 = vmatprep.subr.mxu0 0.0
    %2226 = vmatpush1.msra.mxu0 %v2040
    %2227 = vmatprep.subr.mxu0 0.0
    %2228 = vmatpush2.msra.mxu0 0.0
    %2229 = vmatprep.subr.mxu0 0.0
    %2230 = vmatpush2.msra.mxu0 0.0
    %2231 = vmatprep.subr.mxu0 0.0
    %2232 = vmatpush2.msra.mxu0 0.0
    %2233 = vmatprep.subr.mxu0 0.0
    %2234 = vmatpush2.msra.mxu0 0.0
    %2235 = vmatprep.subr.mxu0 0.0
    %2236 = vmatpush2.msra.mxu0 0.0
    %2237 = vmatprep.subr.mxu0 0.0
    %2238 = vmatpush2.msra.mxu0 0.0
    %2239 = vmatprep.subr.mxu0 0.0
    %2240 = vmatpush2.msra.mxu0 0.0
    %2241 = vmatprep.subr.mxu0 0.0
    %2242 = vmatpush2.msra.mxu0 0.0
    %2243 = vmatprep.subr.mxu0 0.0
    %2244 = vmatpush2.msra.mxu0 0.0
    %2245 = vmatprep.subr.mxu0 0.0
    %2246 = vmatpush2.msra.mxu0 0.0
    %2247 = vmatprep.subr.mxu0 0.0
    %2248 = vmatpush2.msra.mxu0 0.0
    %2249 = vmatprep.subr.mxu0 0.0
    %2250 = vmatpush2.msra.mxu0 0.0
    %2251 = vmatprep.subr.mxu0 0.0
    %2252 = vmatpush2.msra.mxu0 0.0
    %2253 = vmatprep.subr.mxu0 0.0
    %2254 = vmatpush2.msra.mxu0 0.0
    %2255 = vmatprep.subr.mxu0 0.0
    %2256 = vmatpush2.msra.mxu0 0.0
    %2257 = vmatprep.subr.mxu0 0.0
    %2258 = vmatpush2.msra.mxu0 0.0
    %2259 = vmatprep.mubr.f32.mxu0 0.0
    %2260 = vmatmul.mubr.f32.gmra.mxu0 %v2193
    %v2261 = vpop.f32.mrf.mxu0
    %v2262 = vadd.f32 0.0, %v2261
    %v2263 = vpop.f32.mrf.mxu0
    %2264 = vdwg.mxu0
    %v2266 = vsel %vm696, %v1731, 0
    %2268 = vmatprep.subr.mxu0 0.0
    %2269 = vmatpush1.msra.mxu0 0.0
    %2270 = vmatprep.subr.mxu0 0.0
    %2271 = vmatpush1.msra.mxu0 0.0
    %2272 = vmatprep.subr.mxu0 0.0
    %2273 = vmatpush1.msra.mxu0 0.0
    %2274 = vmatprep.subr.mxu0 0.0
    %2275 = vmatpush1.msra.mxu0 0.0
    %2276 = vmatprep.subr.mxu0 0.0
    %2277 = vmatpush1.msra.mxu0 0.0
    %2278 = vmatprep.subr.mxu0 0.0
    %2279 = vmatpush1.msra.mxu0 0.0
    %2280 = vmatprep.subr.mxu0 0.0
    %2281 = vmatpush1.msra.mxu0 0.0
    %2282 = vmatprep.subr.mxu0 0.0
    %2283 = vmatpush1.msra.mxu0 0.0
    %2284 = vmatprep.subr.mxu0 0.0
    %2285 = vmatpush1.msra.mxu0 0.0
    %2286 = vmatprep.subr.mxu0 0.0
    %2287 = vmatpush1.msra.mxu0 0.0
    %2288 = vmatprep.subr.mxu0 0.0
    %2289 = vmatpush1.msra.mxu0 0.0
    %2290 = vmatprep.subr.mxu0 0.0
    %2291 = vmatpush1.msra.mxu0 0.0
    %2292 = vmatprep.subr.mxu0 0.0
    %2293 = vmatpush1.msra.mxu0 0.0
    %2294 = vmatprep.subr.mxu0 0.0
    %2295 = vmatpush1.msra.mxu0 0.0
    %2296 = vmatprep.subr.mxu0 0.0
    %2297 = vmatpush1.msra.mxu0 0.0
    %2298 = vmatprep.subr.mxu0 0.0
    %2299 = vmatpush1.msra.mxu0 %v2041
    %2300 = vmatprep.subr.mxu0 0.0
    %2301 = vmatpush2.msra.mxu0 0.0
    %2302 = vmatprep.subr.mxu0 0.0
    %2303 = vmatpush2.msra.mxu0 0.0
    %2304 = vmatprep.subr.mxu0 0.0
    %2305 = vmatpush2.msra.mxu0 0.0
    %2306 = vmatprep.subr.mxu0 0.0
    %2307 = vmatpush2.msra.mxu0 0.0
    %2308 = vmatprep.subr.mxu0 0.0
    %2309 = vmatpush2.msra.mxu0 0.0
    %2310 = vmatprep.subr.mxu0 0.0
    %2311 = vmatpush2.msra.mxu0 0.0
    %2312 = vmatprep.subr.mxu0 0.0
    %2313 = vmatpush2.msra.mxu0 0.0
    %2314 = vmatprep.subr.mxu0 0.0
    %2315 = vmatpush2.msra.mxu0 0.0
    %2316 = vmatprep.subr.mxu0 0.0
    %2317 = vmatpush2.msra.mxu0 0.0
    %2318 = vmatprep.subr.mxu0 0.0
    %2319 = vmatpush2.msra.mxu0 0.0
    %2320 = vmatprep.subr.mxu0 0.0
    %2321 = vmatpush2.msra.mxu0 0.0
    %2322 = vmatprep.subr.mxu0 0.0
    %2323 = vmatpush2.msra.mxu0 0.0
    %2324 = vmatprep.subr.mxu0 0.0
    %2325 = vmatpush2.msra.mxu0 0.0
    %2326 = vmatprep.subr.mxu0 0.0
    %2327 = vmatpush2.msra.mxu0 0.0
    %2328 = vmatprep.subr.mxu0 0.0
    %2329 = vmatpush2.msra.mxu0 0.0
    %2330 = vmatprep.subr.mxu0 0.0
    %2331 = vmatpush2.msra.mxu0 0.0
    %2332 = vmatprep.mubr.f32.mxu0 0.0
    %2333 = vmatmul.mubr.f32.gmra.mxu0 %v2266
    %v2334 = vpop.f32.mrf.mxu0
    %v2335 = vadd.f32 0.0, %v2334
    %v2336 = vpop.f32.mrf.mxu0
    %2337 = vdwg.mxu0
    %v2339 = vsel %vm696, %v1807, 0
    %2341 = vmatprep.subr.mxu0 0.0
    %2342 = vmatpush1.msra.mxu0 0.0
    %2343 = vmatprep.subr.mxu0 0.0
    %2344 = vmatpush1.msra.mxu0 0.0
    %2345 = vmatprep.subr.mxu0 0.0
    %2346 = vmatpush1.msra.mxu0 0.0
    %2347 = vmatprep.subr.mxu0 0.0
    %2348 = vmatpush1.msra.mxu0 0.0
    %2349 = vmatprep.subr.mxu0 0.0
    %2350 = vmatpush1.msra.mxu0 0.0
    %2351 = vmatprep.subr.mxu0 0.0
    %2352 = vmatpush1.msra.mxu0 0.0
    %2353 = vmatprep.subr.mxu0 0.0
    %2354 = vmatpush1.msra.mxu0 0.0
    %2355 = vmatprep.subr.mxu0 0.0
    %2356 = vmatpush1.msra.mxu0 0.0
    %2357 = vmatprep.subr.mxu0 0.0
    %2358 = vmatpush1.msra.mxu0 0.0
    %2359 = vmatprep.subr.mxu0 0.0
    %2360 = vmatpush1.msra.mxu0 0.0
    %2361 = vmatprep.subr.mxu0 0.0
    %2362 = vmatpush1.msra.mxu0 0.0
    %2363 = vmatprep.subr.mxu0 0.0
    %2364 = vmatpush1.msra.mxu0 0.0
    %2365 = vmatprep.subr.mxu0 0.0
    %2366 = vmatpush1.msra.mxu0 0.0
    %2367 = vmatprep.subr.mxu0 0.0
    %2368 = vmatpush1.msra.mxu0 0.0
    %2369 = vmatprep.subr.mxu0 0.0
    %2370 = vmatpush1.msra.mxu0 0.0
    %2371 = vmatprep.subr.mxu0 0.0
    %2372 = vmatpush1.msra.mxu0 %v2042
    %2373 = vmatprep.subr.mxu0 0.0
    %2374 = vmatpush2.msra.mxu0 0.0
    %2375 = vmatprep.subr.mxu0 0.0
    %2376 = vmatpush2.msra.mxu0 0.0
    %2377 = vmatprep.subr.mxu0 0.0
    %2378 = vmatpush2.msra.mxu0 0.0
    %2379 = vmatprep.subr.mxu0 0.0
    %2380 = vmatpush2.msra.mxu0 0.0
    %2381 = vmatprep.subr.mxu0 0.0
    %2382 = vmatpush2.msra.mxu0 0.0
    %2383 = vmatprep.subr.mxu0 0.0
    %2384 = vmatpush2.msra.mxu0 0.0
    %2385 = vmatprep.subr.mxu0 0.0
    %2386 = vmatpush2.msra.mxu0 0.0
    %2387 = vmatprep.subr.mxu0 0.0
    %2388 = vmatpush2.msra.mxu0 0.0
    %2389 = vmatprep.subr.mxu0 0.0
    %2390 = vmatpush2.msra.mxu0 0.0
    %2391 = vmatprep.subr.mxu0 0.0
    %2392 = vmatpush2.msra.mxu0 0.0
    %2393 = vmatprep.subr.mxu0 0.0
    %2394 = vmatpush2.msra.mxu0 0.0
    %2395 = vmatprep.subr.mxu0 0.0
    %2396 = vmatpush2.msra.mxu0 0.0
    %2397 = vmatprep.subr.mxu0 0.0
    %2398 = vmatpush2.msra.mxu0 0.0
    %2399 = vmatprep.subr.mxu0 0.0
    %2400 = vmatpush2.msra.mxu0 0.0
    %2401 = vmatprep.subr.mxu0 0.0
    %2402 = vmatpush2.msra.mxu0 0.0
    %2403 = vmatprep.subr.mxu0 0.0
    %2404 = vmatpush2.msra.mxu0 0.0
    %2405 = vmatprep.mubr.f32.mxu0 0.0
    %2406 = vmatmul.mubr.f32.gmra.mxu0 %v2339
    %v2407 = vpop.f32.mrf.mxu0
    %v2408 = vadd.f32 0.0, %v2407
    %v2409 = vpop.f32.mrf.mxu0
    %2410 = vdwg.mxu0
    %v2412 = vsel %vm696, %v1883, 0
    %2414 = vmatprep.subr.mxu0 0.0
    %2415 = vmatpush1.msra.mxu0 0.0
    %2416 = vmatprep.subr.mxu0 0.0
    %2417 = vmatpush1.msra.mxu0 0.0
    %2418 = vmatprep.subr.mxu0 0.0
    %2419 = vmatpush1.msra.mxu0 0.0
    %2420 = vmatprep.subr.mxu0 0.0
    %2421 = vmatpush1.msra.mxu0 0.0
    %2422 = vmatprep.subr.mxu0 0.0
    %2423 = vmatpush1.msra.mxu0 0.0
    %2424 = vmatprep.subr.mxu0 0.0
    %2425 = vmatpush1.msra.mxu0 0.0
    %2426 = vmatprep.subr.mxu0 0.0
    %2427 = vmatpush1.msra.mxu0 0.0
    %2428 = vmatprep.subr.mxu0 0.0
    %2429 = vmatpush1.msra.mxu0 0.0
    %2430 = vmatprep.subr.mxu0 0.0
    %2431 = vmatpush1.msra.mxu0 0.0
    %2432 = vmatprep.subr.mxu0 0.0
    %2433 = vmatpush1.msra.mxu0 0.0
    %2434 = vmatprep.subr.mxu0 0.0
    %2435 = vmatpush1.msra.mxu0 0.0
    %2436 = vmatprep.subr.mxu0 0.0
    %2437 = vmatpush1.msra.mxu0 0.0
    %2438 = vmatprep.subr.mxu0 0.0
    %2439 = vmatpush1.msra.mxu0 0.0
    %2440 = vmatprep.subr.mxu0 0.0
    %2441 = vmatpush1.msra.mxu0 0.0
    %2442 = vmatprep.subr.mxu0 0.0
    %2443 = vmatpush1.msra.mxu0 0.0
    %2444 = vmatprep.subr.mxu0 0.0
    %2445 = vmatpush1.msra.mxu0 %v2043
    %2446 = vmatprep.subr.mxu0 0.0
    %2447 = vmatpush2.msra.mxu0 0.0
    %2448 = vmatprep.subr.mxu0 0.0
    %2449 = vmatpush2.msra.mxu0 0.0
    %2450 = vmatprep.subr.mxu0 0.0
    %2451 = vmatpush2.msra.mxu0 0.0
    %2452 = vmatprep.subr.mxu0 0.0
    %2453 = vmatpush2.msra.mxu0 0.0
    %2454 = vmatprep.subr.mxu0 0.0
    %2455 = vmatpush2.msra.mxu0 0.0
    %2456 = vmatprep.subr.mxu0 0.0
    %2457 = vmatpush2.msra.mxu0 0.0
    %2458 = vmatprep.subr.mxu0 0.0
    %2459 = vmatpush2.msra.mxu0 0.0
    %2460 = vmatprep.subr.mxu0 0.0
    %2461 = vmatpush2.msra.mxu0 0.0
    %2462 = vmatprep.subr.mxu0 0.0
    %2463 = vmatpush2.msra.mxu0 0.0
    %2464 = vmatprep.subr.mxu0 0.0
    %2465 = vmatpush2.msra.mxu0 0.0
    %2466 = vmatprep.subr.mxu0 0.0
    %2467 = vmatpush2.msra.mxu0 0.0
    %2468 = vmatprep.subr.mxu0 0.0
    %2469 = vmatpush2.msra.mxu0 0.0
    %2470 = vmatprep.subr.mxu0 0.0
    %2471 = vmatpush2.msra.mxu0 0.0
    %2472 = vmatprep.subr.mxu0 0.0
    %2473 = vmatpush2.msra.mxu0 0.0
    %2474 = vmatprep.subr.mxu0 0.0
    %2475 = vmatpush2.msra.mxu0 0.0
    %2476 = vmatprep.subr.mxu0 0.0
    %2477 = vmatpush2.msra.mxu0 0.0
    %2478 = vmatprep.mubr.f32.mxu0 0.0
    %2479 = vmatmul.mubr.f32.gmra.mxu0 %v2412
    %v2480 = vpop.f32.mrf.mxu0
    %v2481 = vadd.f32 0.0, %v2480
    %v2482 = vpop.f32.mrf.mxu0
    %2483 = vdwg.mxu0
    %v2485 = vsel %vm696, %v1959, 0
    %2487 = vmatprep.subr.mxu0 0.0
    %2488 = vmatpush1.msra.mxu0 0.0
    %2489 = vmatprep.subr.mxu0 0.0
    %2490 = vmatpush1.msra.mxu0 0.0
    %2491 = vmatprep.subr.mxu0 0.0
    %2492 = vmatpush1.msra.mxu0 0.0
    %2493 = vmatprep.subr.mxu0 0.0
    %2494 = vmatpush1.msra.mxu0 0.0
    %2495 = vmatprep.subr.mxu0 0.0
    %2496 = vmatpush1.msra.mxu0 0.0
    %2497 = vmatprep.subr.mxu0 0.0
    %2498 = vmatpush1.msra.mxu0 0.0
    %2499 = vmatprep.subr.mxu0 0.0
    %2500 = vmatpush1.msra.mxu0 0.0
    %2501 = vmatprep.subr.mxu0 0.0
    %2502 = vmatpush1.msra.mxu0 0.0
    %2503 = vmatprep.subr.mxu0 0.0
    %2504 = vmatpush1.msra.mxu0 0.0
    %2505 = vmatprep.subr.mxu0 0.0
    %2506 = vmatpush1.msra.mxu0 0.0
    %2507 = vmatprep.subr.mxu0 0.0
    %2508 = vmatpush1.msra.mxu0 0.0
    %2509 = vmatprep.subr.mxu0 0.0
    %2510 = vmatpush1.msra.mxu0 0.0
    %2511 = vmatprep.subr.mxu0 0.0
    %2512 = vmatpush1.msra.mxu0 0.0
    %2513 = vmatprep.subr.mxu0 0.0
    %2514 = vmatpush1.msra.mxu0 0.0
    %2515 = vmatprep.subr.mxu0 0.0
    %2516 = vmatpush1.msra.mxu0 0.0
    %2517 = vmatprep.subr.mxu0 0.0
    %2518 = vmatpush1.msra.mxu0 %v2044
    %2519 = vmatprep.subr.mxu0 0.0
    %2520 = vmatpush2.msra.mxu0 0.0
    %2521 = vmatprep.subr.mxu0 0.0
    %2522 = vmatpush2.msra.mxu0 0.0
    %2523 = vmatprep.subr.mxu0 0.0
    %2524 = vmatpush2.msra.mxu0 0.0
    %2525 = vmatprep.subr.mxu0 0.0
    %2526 = vmatpush2.msra.mxu0 0.0
    %2527 = vmatprep.subr.mxu0 0.0
    %2528 = vmatpush2.msra.mxu0 0.0
    %2529 = vmatprep.subr.mxu0 0.0
    %2530 = vmatpush2.msra.mxu0 0.0
    %2531 = vmatprep.subr.mxu0 0.0
    %2532 = vmatpush2.msra.mxu0 0.0
    %2533 = vmatprep.subr.mxu0 0.0
    %2534 = vmatpush2.msra.mxu0 0.0
    %2535 = vmatprep.subr.mxu0 0.0
    %2536 = vmatpush2.msra.mxu0 0.0
    %2537 = vmatprep.subr.mxu0 0.0
    %2538 = vmatpush2.msra.mxu0 0.0
    %2539 = vmatprep.subr.mxu0 0.0
    %2540 = vmatpush2.msra.mxu0 0.0
    %2541 = vmatprep.subr.mxu0 0.0
    %2542 = vmatpush2.msra.mxu0 0.0
    %2543 = vmatprep.subr.mxu0 0.0
    %2544 = vmatpush2.msra.mxu0 0.0
    %2545 = vmatprep.subr.mxu0 0.0
    %2546 = vmatpush2.msra.mxu0 0.0
    %2547 = vmatprep.subr.mxu0 0.0
    %2548 = vmatpush2.msra.mxu0 0.0
    %2549 = vmatprep.subr.mxu0 0.0
    %2550 = vmatpush2.msra.mxu0 0.0
    %2551 = vmatprep.mubr.f32.mxu0 0.0
    %2552 = vmatmul.mubr.f32.gmra.mxu0 %v2485
    %v2553 = vpop.f32.mrf.mxu0
    %v2554 = vadd.f32 0.0, %v2553
    %v2555 = vpop.f32.mrf.mxu0
    %2556 = vdwg.mxu0
    %v2558 = vsel %vm696, %v2035, 0
    %2560 = vmatprep.subr.mxu0 0.0
    %2561 = vmatpush1.msra.mxu0 0.0
    %2562 = vmatprep.subr.mxu0 0.0
    %2563 = vmatpush1.msra.mxu0 0.0
    %2564 = vmatprep.subr.mxu0 0.0
    %2565 = vmatpush1.msra.mxu0 0.0
    %2566 = vmatprep.subr.mxu0 0.0
    %2567 = vmatpush1.msra.mxu0 0.0
    %2568 = vmatprep.subr.mxu0 0.0
    %2569 = vmatpush1.msra.mxu0 0.0
    %2570 = vmatprep.subr.mxu0 0.0
    %2571 = vmatpush1.msra.mxu0 0.0
    %2572 = vmatprep.subr.mxu0 0.0
    %2573 = vmatpush1.msra.mxu0 0.0
    %2574 = vmatprep.subr.mxu0 0.0
    %2575 = vmatpush1.msra.mxu0 0.0
    %2576 = vmatprep.subr.mxu0 0.0
    %2577 = vmatpush1.msra.mxu0 0.0
    %2578 = vmatprep.subr.mxu0 0.0
    %2579 = vmatpush1.msra.mxu0 0.0
    %2580 = vmatprep.subr.mxu0 0.0
    %2581 = vmatpush1.msra.mxu0 0.0
    %2582 = vmatprep.subr.mxu0 0.0
    %2583 = vmatpush1.msra.mxu0 0.0
    %2584 = vmatprep.subr.mxu0 0.0
    %2585 = vmatpush1.msra.mxu0 0.0
    %2586 = vmatprep.subr.mxu0 0.0
    %2587 = vmatpush1.msra.mxu0 0.0
    %2588 = vmatprep.subr.mxu0 0.0
    %2589 = vmatpush1.msra.mxu0 0.0
    %2590 = vmatprep.subr.mxu0 0.0
    %2591 = vmatpush1.msra.mxu0 %v2045
    %2592 = vmatprep.subr.mxu0 0.0
    %2593 = vmatpush2.msra.mxu0 0.0
    %2594 = vmatprep.subr.mxu0 0.0
    %2595 = vmatpush2.msra.mxu0 0.0
    %2596 = vmatprep.subr.mxu0 0.0
    %2597 = vmatpush2.msra.mxu0 0.0
    %2598 = vmatprep.subr.mxu0 0.0
    %2599 = vmatpush2.msra.mxu0 0.0
    %2600 = vmatprep.subr.mxu0 0.0
    %2601 = vmatpush2.msra.mxu0 0.0
    %2602 = vmatprep.subr.mxu0 0.0
    %2603 = vmatpush2.msra.mxu0 0.0
    %2604 = vmatprep.subr.mxu0 0.0
    %2605 = vmatpush2.msra.mxu0 0.0
    %2606 = vmatprep.subr.mxu0 0.0
    %2607 = vmatpush2.msra.mxu0 0.0
    %2608 = vmatprep.subr.mxu0 0.0
    %2609 = vmatpush2.msra.mxu0 0.0
    %2610 = vmatprep.subr.mxu0 0.0
    %2611 = vmatpush2.msra.mxu0 0.0
    %2612 = vmatprep.subr.mxu0 0.0
    %2613 = vmatpush2.msra.mxu0 0.0
    %2614 = vmatprep.subr.mxu0 0.0
    %2615 = vmatpush2.msra.mxu0 0.0
    %2616 = vmatprep.subr.mxu0 0.0
    %2617 = vmatpush2.msra.mxu0 0.0
    %2618 = vmatprep.subr.mxu0 0.0
    %2619 = vmatpush2.msra.mxu0 0.0
    %2620 = vmatprep.subr.mxu0 0.0
    %2621 = vmatpush2.msra.mxu0 0.0
    %2622 = vmatprep.subr.mxu0 0.0
    %2623 = vmatpush2.msra.mxu0 0.0
    %2624 = vmatprep.mubr.f32.mxu0 0.0
    %2625 = vmatmul.mubr.f32.gmra.mxu0 %v2558
    %v2626 = vpop.f32.mrf.mxu0
    %v2627 = vadd.f32 0.0, %v2626
    %v2628 = vpop.f32.mrf.mxu0
    %2629 = vdwg.mxu0
    %v2630 = vsel %vm40, %v2116, 0.0
    %v2631 = vsel %vm40, %v2262, 0.0
    %v2632 = vadd.f32 %v2630, %v2631
    %v2633 = vsel %vm40, %v2408, 0.0
    %v2634 = vadd.f32 %v2632, %v2633
    %v2635 = vsel %vm40, %v2554, 0.0
    %v2636 = vadd.f32 %v2634, %v2635
    %v2637 = vsel %vm40, %v2189, 0.0
    %v2638 = vsel %vm40, %v2335, 0.0
    %v2639 = vadd.f32 %v2637, %v2638
    %v2640 = vsel %vm40, %v2481, 0.0
    %v2641 = vadd.f32 %v2639, %v2640
    %v2642 = vsel %vm40, %v2627, 0.0
    %v2643 = vadd.f32 %v2641, %v2642
    %v2644 = vadd.f32 %v36, %v2636
    %v2645 = vadd.f32 %v37, %v2643
    %v2646 = vsel %vm40, %v2644, 0.0
    %2647 = vadd.xlane.f32.xlu0 %v2646
    %v2648 = vpop.xlane.xlu0 %2647
    %v2649 = vsel %vm40, %v2645, 0.0
    %2650 = vadd.xlane.f32.xlu0 %v2649
    %v2651 = vpop.xlane.xlu0 %2650
    %v2652 = vmul.f32 %v2644, %v2644
    %v2653 = vmul.f32 %v2645, %v2645
    %v2654 = vsel %vm40, %v2652, 0.0
    %2655 = vadd.xlane.f32.xlu0 %v2654
    %v2656 = vpop.xlane.xlu0 %2655
    %v2657 = vsel %vm40, %v2653, 0.0
    %2658 = vadd.xlane.f32.xlu0 %v2657
    %v2659 = vpop.xlane.xlu0 %2658
    %v2660 = vmul.f32 %v2648, 0.03125
    %v2661 = vmul.f32 %v2651, 0.03125
    %v2662 = vmul.f32 %v2656, 0.03125
    %v2663 = vmul.f32 %v2659, 0.03125
    %v2664 = vmul.f32 %v2660, %v2660
    %v2665 = vmul.f32 %v2661, %v2661
    %v2666 = vsub.f32 %v2662, %v2664
    %v2667 = vsub.f32 %v2663, %v2665
    %v2668 = vsub.f32 %v2644, %v2660
    %v2669 = vsub.f32 %v2645, %v2661
    %v2670 = vadd.f32 %v2666, 1e-06
    %v2671 = vadd.f32 %v2667, 1e-06
    %v2672 = vrsqrt.pop %v2670
    %v2673 = vrsqrt.pop %v2671
    %v2674 = vmul.f32 %v2668, %v2672
    %v2675 = vmul.f32 %v2669, %v2673
    %v2676 = vmul.f32 %v2674, %v75
    %v2677 = vmul.f32 %v2675, %v75
    %v2678 = vadd.f32 %v2676, %v83
    %v2679 = vadd.f32 %v2677, %v83
    %v2680 = vld [vmem:[%s6] sm:$0xff]
    %v2681 = vld [vmem:[%s6 + $0x8] sm:$0xff]
    %v2682 = vld [vmem:[%s6 + $0x10] sm:$0xff]
    %v2683 = vld [vmem:[%s6 + $0x18] sm:$0xff]
    %v2684 = vld [vmem:[%s7] sm:$0x1]
    %v2686 = vlaneseq
    %v2687 = vshrl.u32 %v2686, 7
    %v2688 = vsub.s32 0, %v2687
    %v2689 = vrot.slane %v2684, %v2688
    %v2692 = vsel %vm40, %v2678, 0
    %v2695 = vsel %vm40, %v2679, 0
    %2697 = vmatprep.subr.mxu0 0.0
    %2698 = vmatpush1.msra.mxu0 0.0
    %2699 = vmatprep.subr.mxu0 0.0
    %2700 = vmatpush1.msra.mxu0 0.0
    %2701 = vmatprep.subr.mxu0 0.0
    %2702 = vmatpush1.msra.mxu0 0.0
    %2703 = vmatprep.subr.mxu0 0.0
    %2704 = vmatpush1.msra.mxu0 0.0
    %2705 = vmatprep.subr.mxu0 0.0
    %2706 = vmatpush1.msra.mxu0 0.0
    %2707 = vmatprep.subr.mxu0 0.0
    %2708 = vmatpush1.msra.mxu0 0.0
    %2709 = vmatprep.subr.mxu0 0.0
    %2710 = vmatpush1.msra.mxu0 0.0
    %2711 = vmatprep.subr.mxu0 0.0
    %2712 = vmatpush1.msra.mxu0 0.0
    %2713 = vmatprep.subr.mxu0 0.0
    %2714 = vmatpush1.msra.mxu0 0.0
    %2715 = vmatprep.subr.mxu0 0.0
    %2716 = vmatpush1.msra.mxu0 0.0
    %2717 = vmatprep.subr.mxu0 0.0
    %2718 = vmatpush1.msra.mxu0 0.0
    %2719 = vmatprep.subr.mxu0 0.0
    %2720 = vmatpush1.msra.mxu0 0.0
    %2721 = vmatprep.subr.mxu0 0.0
    %2722 = vmatpush1.msra.mxu0 %v2683
    %2723 = vmatprep.subr.mxu0 0.0
    %2724 = vmatpush1.msra.mxu0 %v2682
    %2725 = vmatprep.subr.mxu0 0.0
    %2726 = vmatpush1.msra.mxu0 %v2681
    %2727 = vmatprep.subr.mxu0 0.0
    %2728 = vmatpush1.msra.mxu0 %v2680
    %2729 = vmatprep.subr.mxu0 0.0
    %2730 = vmatpush2.msra.mxu0 0.0
    %2731 = vmatprep.subr.mxu0 0.0
    %2732 = vmatpush2.msra.mxu0 0.0
    %2733 = vmatprep.subr.mxu0 0.0
    %2734 = vmatpush2.msra.mxu0 0.0
    %2735 = vmatprep.subr.mxu0 0.0
    %2736 = vmatpush2.msra.mxu0 0.0
    %2737 = vmatprep.subr.mxu0 0.0
    %2738 = vmatpush2.msra.mxu0 0.0
    %2739 = vmatprep.subr.mxu0 0.0
    %2740 = vmatpush2.msra.mxu0 0.0
    %2741 = vmatprep.subr.mxu0 0.0
    %2742 = vmatpush2.msra.mxu0 0.0
    %2743 = vmatprep.subr.mxu0 0.0
    %2744 = vmatpush2.msra.mxu0 0.0
    %2745 = vmatprep.subr.mxu0 0.0
    %2746 = vmatpush2.msra.mxu0 0.0
    %2747 = vmatprep.subr.mxu0 0.0
    %2748 = vmatpush2.msra.mxu0 0.0
    %2749 = vmatprep.subr.mxu0 0.0
    %2750 = vmatpush2.msra.mxu0 0.0
    %2751 = vmatprep.subr.mxu0 0.0
    %2752 = vmatpush2.msra.mxu0 0.0
    %2753 = vmatprep.subr.mxu0 0.0
    %2754 = vmatpush2.msra.mxu0 0.0
    %2755 = vmatprep.subr.mxu0 0.0
    %2756 = vmatpush2.msra.mxu0 0.0
    %2757 = vmatprep.subr.mxu0 0.0
    %2758 = vmatpush2.msra.mxu0 0.0
    %2759 = vmatprep.subr.mxu0 0.0
    %2760 = vmatpush2.msra.mxu0 0.0
    %2761 = vmatprep.mubr.f32.mxu0 0.0
    %2762 = vmatmul.mubr.f32.gmra.mxu0 %v2692
    %v2763 = vpop.f32.mrf.mxu0
    %v2764 = vadd.f32 %v2689, %v2763
    %v2765 = vpop.f32.mrf.mxu0
    %2766 = vmatprep.mubr.f32.mxu0 0.0
    %2767 = vmatmul.mubr.f32.gmra.mxu0 %v2695
    %v2768 = vpop.f32.mrf.mxu0
    %v2769 = vadd.f32 %v2689, %v2768
    %v2770 = vpop.f32.mrf.mxu0
    %2771 = vdwg.mxu0
    %v2772 = vmax.f32 %v2764, 0.0
    %v2773 = vmax.f32 %v2769, 0.0
    %v2774 = vld [vmem:[%s8] sm:$0xff]
    %v2775 = vld [vmem:[%s8 + $0x8] sm:$0xff]
    %v2776 = vld [vmem:[%s8 + $0x10] sm:$0xff]
    %v2777 = vld [vmem:[%s8 + $0x18] sm:$0xff]
    %v2778 = vld [vmem:[%s8 + $0x20] sm:$0xff]
    %v2779 = vld [vmem:[%s8 + $0x28] sm:$0xff]
    %v2780 = vld [vmem:[%s8 + $0x30] sm:$0xff]
    %v2781 = vld [vmem:[%s8 + $0x38] sm:$0xff]
    %v2782 = vld [vmem:[%s9] sm:$0x1]
    %v2784 = vlaneseq
    %v2785 = vshrl.u32 %v2784, 7
    %v2786 = vsub.s32 0, %v2785
    %v2787 = vrot.slane %v2782, %v2786
    %vm2789 = vcmask 523264
    %v2791 = vsel %vm2789, %v2772, 0
    %v2794 = vsel %vm2789, %v2773, 0
    %2796 = vmatprep.subr.mxu0 0.0
    %2797 = vmatpush1.msra.mxu0 0.0
    %2798 = vmatprep.subr.mxu0 0.0
    %2799 = vmatpush1.msra.mxu0 0.0
    %2800 = vmatprep.subr.mxu0 0.0
    %2801 = vmatpush1.msra.mxu0 0.0
    %2802 = vmatprep.subr.mxu0 0.0
    %2803 = vmatpush1.msra.mxu0 0.0
    %2804 = vmatprep.subr.mxu0 0.0
    %2805 = vmatpush1.msra.mxu0 0.0
    %2806 = vmatprep.subr.mxu0 0.0
    %2807 = vmatpush1.msra.mxu0 0.0
    %2808 = vmatprep.subr.mxu0 0.0
    %2809 = vmatpush1.msra.mxu0 0.0
    %2810 = vmatprep.subr.mxu0 0.0
    %2811 = vmatpush1.msra.mxu0 0.0
    %2812 = vmatprep.subr.mxu0 0.0
    %2813 = vmatpush1.msra.mxu0 %v2781
    %2814 = vmatprep.subr.mxu0 0.0
    %2815 = vmatpush1.msra.mxu0 %v2780
    %2816 = vmatprep.subr.mxu0 0.0
    %2817 = vmatpush1.msra.mxu0 %v2779
    %2818 = vmatprep.subr.mxu0 0.0
    %2819 = vmatpush1.msra.mxu0 %v2778
    %2820 = vmatprep.subr.mxu0 0.0
    %2821 = vmatpush1.msra.mxu0 %v2777
    %2822 = vmatprep.subr.mxu0 0.0
    %2823 = vmatpush1.msra.mxu0 %v2776
    %2824 = vmatprep.subr.mxu0 0.0
    %2825 = vmatpush1.msra.mxu0 %v2775
    %2826 = vmatprep.subr.mxu0 0.0
    %2827 = vmatpush1.msra.mxu0 %v2774
    %2828 = vmatprep.subr.mxu0 0.0
    %2829 = vmatpush2.msra.mxu0 0.0
    %2830 = vmatprep.subr.mxu0 0.0
    %2831 = vmatpush2.msra.mxu0 0.0
    %2832 = vmatprep.subr.mxu0 0.0
    %2833 = vmatpush2.msra.mxu0 0.0
    %2834 = vmatprep.subr.mxu0 0.0
    %2835 = vmatpush2.msra.mxu0 0.0
    %2836 = vmatprep.subr.mxu0 0.0
    %2837 = vmatpush2.msra.mxu0 0.0
    %2838 = vmatprep.subr.mxu0 0.0
    %2839 = vmatpush2.msra.mxu0 0.0
    %2840 = vmatprep.subr.mxu0 0.0
    %2841 = vmatpush2.msra.mxu0 0.0
    %2842 = vmatprep.subr.mxu0 0.0
    %2843 = vmatpush2.msra.mxu0 0.0
    %2844 = vmatprep.subr.mxu0 0.0
    %2845 = vmatpush2.msra.mxu0 0.0
    %2846 = vmatprep.subr.mxu0 0.0
    %2847 = vmatpush2.msra.mxu0 0.0
    %2848 = vmatprep.subr.mxu0 0.0
    %2849 = vmatpush2.msra.mxu0 0.0
    %2850 = vmatprep.subr.mxu0 0.0
    %2851 = vmatpush2.msra.mxu0 0.0
    %2852 = vmatprep.subr.mxu0 0.0
    %2853 = vmatpush2.msra.mxu0 0.0
    %2854 = vmatprep.subr.mxu0 0.0
    %2855 = vmatpush2.msra.mxu0 0.0
    %2856 = vmatprep.subr.mxu0 0.0
    %2857 = vmatpush2.msra.mxu0 0.0
    %2858 = vmatprep.subr.mxu0 0.0
    %2859 = vmatpush2.msra.mxu0 0.0
    %2860 = vmatprep.mubr.f32.mxu0 0.0
    %2861 = vmatmul.mubr.f32.gmra.mxu0 %v2791
    %v2862 = vpop.f32.mrf.mxu0
    %v2863 = vadd.f32 %v2787, %v2862
    %v2864 = vpop.f32.mrf.mxu0
    %2865 = vmatprep.mubr.f32.mxu0 0.0
    %2866 = vmatmul.mubr.f32.gmra.mxu0 %v2794
    %v2867 = vpop.f32.mrf.mxu0
    %v2868 = vadd.f32 %v2787, %v2867
    %v2869 = vpop.f32.mrf.mxu0
    %2870 = vdwg.mxu0
    %v2871 = vadd.f32 %v2644, %v2863
    %v2872 = vadd.f32 %v2645, %v2868
    %2873 = vst.msk [vmem:[#allocation2] sm:$0xff] %vm40, %v2871
    %2874 = vst.msk [vmem:[#allocation2 + $0x8] sm:$0xff] %vm40, %v2872
    // Predicated region
    $region42: #{tpu_custom_call.1} parent=1 // pred_check
      _
    $region43: #{tpu_custom_call.1} parent=1 // pred_check_branch
      %2876 = sbr.rel (0) target = $region45
    $region44: #{tpu_custom_call.1} parent=1 // pred_region
      %s2878 = ssub.s32 256, 256
      %2879 = vsyncadd [#allocation3], %s2878
      %s2880 = sshll.u32 [#allocation2], 4
      %s2881 = int_to_ptr.vmem [resolvable:$true] %s2880
      %2886 = dma.vmem_to_hbm [thread:$0]  %s2881, 256, %s10, [#allocation3], 128, 128, 8
    $region45: #{tpu_custom_call.1} parent=1 // pred_fallthru
      _
    // Predicated region
    $region46: #{tpu_custom_call.1} parent=1 // pred_check
      _
    $region47: #{tpu_custom_call.1} parent=1 // pred_check_branch
      %2888 = sbr.rel (0) target = $region49
    $region48: #{tpu_custom_call.1} parent=1 // pred_region
      %2889 = dma.done [#allocation3], 256
    $region49: #{tpu_custom_call.1} parent=1 // pred_fallthru
      _
    %2890 = vsyncpa [#allocation3], 1

</llo_original>
